<compile_context>
chip_gen: v6e
topology: v6e:2x2x1
jax: 0.10.0
libtpu: 0.0.40
codegen_flags: <defaults>
</compile_context>

<pallas_src>
import functools

import jax
import jax.numpy as jnp
from jax.experimental import pallas as pl
from jax.experimental.pallas import tpu as pltpu  # noqa: F401  (TPU backend)


def _attn_kernel(q_ref, k_ref, v_ref, o_ref, *, inv_scale):
    # q_ref: (1, H, Sq, D), k_ref: (H, Sk, D), v_ref: (H, Sk, Dv)
    # o_ref: (1, H, Sq, Dv)
    q = q_ref[0]      # (H, Sq, D)
    k = k_ref[...]    # (H, Sk, D)
    v = v_ref[...]    # (H, Sk, Dv)

    # Batched Q @ K^T, contracting the last dims directly (no k.T relayout).
    s = jnp.einsum("hqd,hkd->hqk", q, k,
                   preferred_element_type=jnp.float32)       # (H, Sq, Sk)

    # Numerically stable softmax over the last dim.
    m = jnp.max(s, axis=-1, keepdims=True)
    e = jnp.exp(s - m)
    denom = jnp.sum(e, axis=-1, keepdims=True)
    p = e * pl.reciprocal(denom, approx=True)                 # EUP vrcp

    # * inv_scale_factor applied to the probabilities (matches the module).
    if inv_scale != 1.0:
        p = p * inv_scale

    # attn @ V
    out = jnp.einsum("hqk,hkv->hqv", p.astype(v.dtype), v,
                     preferred_element_type=jnp.float32)      # (H, Sq, Dv)
    o_ref[0] = out.astype(o_ref.dtype)


def sdpa_pallas(query, k, v, scale_factor=1.0, dropout_p=1.0):
    """query: (B, H, Sq, D);  k: (H, Sk, D);  v: (H, Sk, Dv)."""
    B, H, Sq, D = query.shape
    Hk, Sk, Dk = k.shape
    Hv, Skv, Dv = v.shape
    assert B == 1 and Hk == H and Hv == H and Dk == D and Skv == Sk

    inv_scale = float(scale_factor) ** (-1)

    if dropout_p >= 1.0:
        # PyTorch F.dropout(p=1, training=True) deterministically zeros its
        # input, so the final output is provably all zeros: skip all compute.
        return jnp.zeros((B, H, Sq, Dv), dtype=query.dtype)
    # TODO(synk): random dropout for 0 < p < 1 (training mode) is not
    # reproduced; it would need pltpu.prng_* and a seed convention.
    # p <= 0 (identity) is exact.

    kernel = functools.partial(_attn_kernel, inv_scale=inv_scale)

    # No grid: all operands (~384 KiB fp32) fit comfortably in VMEM, so the
    # whole attention runs in a single Pallas invocation with full-array
    # blocks (default BlockSpecs), eliminating per-grid-step overhead.
    return pl.pallas_call(
        kernel,
        out_shape=jax.ShapeDtypeStruct((B, H, Sq, Dv), query.dtype),
    )(query, k, v)


def sdpa_reference(query, k, v, scale_factor=1.0, dropout_p=1.0):
    inv_scale = float(scale_factor) ** (-1)
    drop_keep = 0.0 if dropout_p >= 1.0 else 1.0
    s = jnp.einsum("bhqd,hkd->bhqk", query, k)
    p = jax.nn.softmax(s, axis=-1) * inv_scale * drop_keep
    return jnp.einsum("bhqk,hkv->bhqv", p, v)


if __name__ == "__main__":
    # Shapes implied by the module (made self-consistent, see header comment).
    B, H, Sq, Sk, D, Dv = 1, 8, 64, 64, 32, 64
    scale_factor = 1
    dropout_p = 1  # module's shipped config

    key = jax.random.PRNGKey(0)
    kq, kk, kv = jax.random.split(key, 3)
    query = jax.random.normal(kq, (B, H, Sq, D), dtype=jnp.float32)
    k_param = jax.random.normal(kk, (H, Sk, D), dtype=jnp.float32)
    v_param = jax.random.normal(kv, (H, Sk, Dv), dtype=jnp.float32)

    # (a) dropout_p = 0 path: actually exercises the attention kernel.
    out_attn = sdpa_pallas(query, k_param, v_param, scale_factor, dropout_p=0.0)
    out_attn = jax.block_until_ready(out_attn)
    ref_attn = sdpa_reference(query, k_param, v_param, scale_factor, dropout_p=0.0)
    assert out_attn.shape == (B, H, Sq, Dv), out_attn.shape
    # Tolerance is relaxed slightly because of the EUP approximate reciprocal.
    assert jnp.allclose(out_attn, ref_attn, atol=1e-2, rtol=1e-2), \
        "mismatch vs reference (dropout_p=0)"

    # (b) module's shipped config (dropout_p = 1): deterministic zeros.
    out_zero = jax.block_until_ready(
        sdpa_pallas(query, k_param, v_param, scale_factor, dropout_p))
    ref_zero = sdpa_reference(query, k_param, v_param, scale_factor, dropout_p)
    assert out_zero.shape == (B, H, Sq, Dv), out_zero.shape
    assert jnp.all(out_zero == 0.0) and jnp.allclose(out_zero, ref_zero)

    print("KERNEL_OK")
</pallas_src>

<mosaic_0001>
module attributes {stable_mosaic.version = 11 : i64} {
  func.func @_attn_kernel(%arg0: memref<1x8x64x32xf32, #tpu.memory_space<vmem>>, %arg1: memref<8x64x32xf32, #tpu.memory_space<vmem>>, %arg2: memref<8x64x64xf32, #tpu.memory_space<vmem>>, %arg3: memref<1x8x64x64xf32, #tpu.memory_space<vmem>>) attributes {dimension_semantics = [], scalar_prefetch = 0 : i64, scratch_operands = 0 : i64, tpu.core_type = #tpu.core_type<tc>} {
    %c0 = arith.constant 0 : index
    %c0_0 = arith.constant 0 : index
    %c0_1 = arith.constant 0 : index
    %c0_2 = arith.constant 0 : index
    %0 = vector.load %arg0[%c0, %c0_0, %c0_1, %c0_2] : memref<1x8x64x32xf32, #tpu.memory_space<vmem>>, vector<1x8x64x32xf32>
    %1 = vector.shape_cast %0 : vector<1x8x64x32xf32> to vector<8x64x32xf32>
    %c0_3 = arith.constant 0 : index
    %c0_4 = arith.constant 0 : index
    %c0_5 = arith.constant 0 : index
    %2 = vector.load %arg1[%c0_3, %c0_4, %c0_5] : memref<8x64x32xf32, #tpu.memory_space<vmem>>, vector<8x64x32xf32>
    %c0_6 = arith.constant 0 : index
    %c0_7 = arith.constant 0 : index
    %c0_8 = arith.constant 0 : index
    %3 = vector.load %arg2[%c0_6, %c0_7, %c0_8] : memref<8x64x64xf32, #tpu.memory_space<vmem>>, vector<8x64x64xf32>
    "tpu.trace_start"() <{level = 10 : i32, message = "hqd,hkd->hqk"}> : () -> ()
    %cst = arith.constant dense<0.000000e+00> : vector<8x64x64xf32>
    %4 = tpu.matmul %1, %2, %cst {dimension_numbers = #tpu.dot_dimension_numbers<[2], [2], [1], [1], [0, 0, 0, 1, 1, 1], [0], [0]>} : vector<8x64x32xf32>, vector<8x64x32xf32>, vector<8x64x64xf32> -> vector<8x64x64xf32>
    "tpu.trace_stop"() : () -> ()
    %cst_9 = arith.constant dense<0xFF800000> : vector<8x64xf32>
    %5 = vector.multi_reduction <maximumf>, %4, %cst_9 [2] : vector<8x64x64xf32> to vector<8x64xf32>
    %6 = vector.shape_cast %5 : vector<8x64xf32> to vector<8x64x1xf32>
    %7 = vector.broadcast %6 : vector<8x64x1xf32> to vector<8x64x64xf32>
    %8 = arith.subf %4, %7 : vector<8x64x64xf32>
    %9 = math.exp %8 : vector<8x64x64xf32>
    %cst_10 = arith.constant dense<0.000000e+00> : vector<8x64xf32>
    %10 = vector.multi_reduction <add>, %9, %cst_10 [2] : vector<8x64x64xf32> to vector<8x64xf32>
    %11 = vector.shape_cast %10 : vector<8x64xf32> to vector<8x64x1xf32>
    %12 = tpu.reciprocal %11 {approx = true} : vector<8x64x1xf32> -> vector<8x64x1xf32>
    %13 = vector.broadcast %12 : vector<8x64x1xf32> to vector<8x64x64xf32>
    %14 = arith.mulf %9, %13 : vector<8x64x64xf32>
    "tpu.trace_start"() <{level = 10 : i32, message = "hqk,hkv->hqv"}> : () -> ()
    %cst_11 = arith.constant dense<0.000000e+00> : vector<8x64x64xf32>
    %15 = tpu.matmul %14, %3, %cst_11 {dimension_numbers = #tpu.dot_dimension_numbers<[2], [1], [1], [2], [0, 0, 0, 1, 1, 2], [0], [0]>} : vector<8x64x64xf32>, vector<8x64x64xf32>, vector<8x64x64xf32> -> vector<8x64x64xf32>
    "tpu.trace_stop"() : () -> ()
    %c0_12 = arith.constant 0 : index
    %c0_13 = arith.constant 0 : index
    %c0_14 = arith.constant 0 : index
    %c0_15 = arith.constant 0 : index
    %16 = vector.load %arg3[%c0_12, %c0_13, %c0_14, %c0_15] : memref<1x8x64x64xf32, #tpu.memory_space<vmem>>, vector<1x8x64x64xf32>
    %17 = vector.shape_cast %16 : vector<1x8x64x64xf32> to vector<8x64x64xf32>
    %18 = vector.shape_cast %15 : vector<8x64x64xf32> to vector<1x8x64x64xf32>
    tpu.vector_store %arg3[%c0_12, %c0_13, %c0_14, %c0_15], %18 {strides = array<i32>} : memref<1x8x64x64xf32, #tpu.memory_space<vmem>>, vector<1x8x64x64xf32>,
    return
  }
}

</mosaic_0001>

<llo_original>
// kernel: tpu_custom_call.1
$region0: #{tpu_custom_call.1}
  #allocation0 [shape = 'u32[]', space=smem, size = 0x4, offset = 0x4, fixed_abs, tag = 'smem constant byte address 0x4 - core index']
  #allocation1 [shape = 'u32[144,128]{1,0:T(1,128)}', space=vmem, size = 0x12000, scoped, tag = 'internal scratch']
  %s0 = inlined_call_operand.vmem [shape: f32[1,8,64,32], index: 0, kind: input, shape index: {}]
  %s1 = inlined_call_operand.vmem [shape: f32[8,64,32], index: 1, kind: input, shape index: {}]
  %s2 = inlined_call_operand.vmem [shape: f32[8,64,64], index: 2, kind: input, shape index: {}]
  %s3 = inlined_call_operand.hbm [shape: f32[1,8,64,64], index: 3, kind: output, shape index: {}]
  %s4 = sld [smem:[#allocation0]]
  $region22: #{tpu_custom_call.1} parent=0
    _
  %s6 = ssub.s32 1, %s4
  %s7 = scalar_select 0, %s6, %s4
  $region1: #{tpu_custom_call.1} parent=0
    #allocation2 [shape = 'u8[262144]{0}', space=vmem, size = 0x40000, scoped, tag = 'output window, operand 0, single buffered']
    #allocation3 [shape = 's32[1]{0}', space=sflag, size = 0x4, scoped, tag = 'scoped memory for tpu_custom_call.1']
    %8 = vsyncpa [#allocation3], 0
    // Predicated region
    $region2: #{tpu_custom_call.1} parent=1 // pred_check
      _
    $region3: #{tpu_custom_call.1} parent=1 // pred_check_branch
      %10 = sbr.rel (0) target = $region5
    $region4: #{tpu_custom_call.1} parent=1 // pred_region
      _
    $region5: #{tpu_custom_call.1} parent=1 // pred_fallthru
      _
    // Predicated region
    $region6: #{tpu_custom_call.1} parent=1 // pred_check
      _
    $region7: #{tpu_custom_call.1} parent=1 // pred_check_branch
      %12 = sbr.rel (0) target = $region9
    $region8: #{tpu_custom_call.1} parent=1 // pred_region
      _
    $region9: #{tpu_custom_call.1} parent=1 // pred_fallthru
      _
    // Predicated region
    $region10: #{tpu_custom_call.1} parent=1 // pred_check
      _
    $region11: #{tpu_custom_call.1} parent=1 // pred_check_branch
      %14 = sbr.rel (0) target = $region13
    $region12: #{tpu_custom_call.1} parent=1 // pred_region
      _
    $region13: #{tpu_custom_call.1} parent=1 // pred_fallthru
      _
    %v15 = vld [vmem:[%s0] sm:$0xff]
    %v16 = vld [vmem:[%s0 + $0x8] sm:$0xff]
    %v17 = vld [vmem:[%s0 + $0x10] sm:$0xff]
    %v18 = vld [vmem:[%s0 + $0x18] sm:$0xff]
    %v19 = vld [vmem:[%s0 + $0x20] sm:$0xff]
    %v20 = vld [vmem:[%s0 + $0x28] sm:$0xff]
    %v21 = vld [vmem:[%s0 + $0x30] sm:$0xff]
    %v22 = vld [vmem:[%s0 + $0x38] sm:$0xff]
    %v23 = vld [vmem:[%s0 + $0x40] sm:$0xff]
    %v24 = vld [vmem:[%s0 + $0x48] sm:$0xff]
    %v25 = vld [vmem:[%s0 + $0x50] sm:$0xff]
    %v26 = vld [vmem:[%s0 + $0x58] sm:$0xff]
    %v27 = vld [vmem:[%s0 + $0x60] sm:$0xff]
    %v28 = vld [vmem:[%s0 + $0x68] sm:$0xff]
    %v29 = vld [vmem:[%s0 + $0x70] sm:$0xff]
    %v30 = vld [vmem:[%s0 + $0x78] sm:$0xff]
    %v31 = vld [vmem:[%s0 + $0x80] sm:$0xff]
    %v32 = vld [vmem:[%s0 + $0x88] sm:$0xff]
    %v33 = vld [vmem:[%s0 + $0x90] sm:$0xff]
    %v34 = vld [vmem:[%s0 + $0x98] sm:$0xff]
    %v35 = vld [vmem:[%s0 + $0xa0] sm:$0xff]
    %v36 = vld [vmem:[%s0 + $0xa8] sm:$0xff]
    %v37 = vld [vmem:[%s0 + $0xb0] sm:$0xff]
    %v38 = vld [vmem:[%s0 + $0xb8] sm:$0xff]
    %v39 = vld [vmem:[%s0 + $0xc0] sm:$0xff]
    %v40 = vld [vmem:[%s0 + $0xc8] sm:$0xff]
    %v41 = vld [vmem:[%s0 + $0xd0] sm:$0xff]
    %v42 = vld [vmem:[%s0 + $0xd8] sm:$0xff]
    %v43 = vld [vmem:[%s0 + $0xe0] sm:$0xff]
    %v44 = vld [vmem:[%s0 + $0xe8] sm:$0xff]
    %v45 = vld [vmem:[%s0 + $0xf0] sm:$0xff]
    %v46 = vld [vmem:[%s0 + $0xf8] sm:$0xff]
    %v47 = vld [vmem:[%s0 + $0x100] sm:$0xff]
    %v48 = vld [vmem:[%s0 + $0x108] sm:$0xff]
    %v49 = vld [vmem:[%s0 + $0x110] sm:$0xff]
    %v50 = vld [vmem:[%s0 + $0x118] sm:$0xff]
    %v51 = vld [vmem:[%s0 + $0x120] sm:$0xff]
    %v52 = vld [vmem:[%s0 + $0x128] sm:$0xff]
    %v53 = vld [vmem:[%s0 + $0x130] sm:$0xff]
    %v54 = vld [vmem:[%s0 + $0x138] sm:$0xff]
    %v55 = vld [vmem:[%s0 + $0x140] sm:$0xff]
    %v56 = vld [vmem:[%s0 + $0x148] sm:$0xff]
    %v57 = vld [vmem:[%s0 + $0x150] sm:$0xff]
    %v58 = vld [vmem:[%s0 + $0x158] sm:$0xff]
    %v59 = vld [vmem:[%s0 + $0x160] sm:$0xff]
    %v60 = vld [vmem:[%s0 + $0x168] sm:$0xff]
    %v61 = vld [vmem:[%s0 + $0x170] sm:$0xff]
    %v62 = vld [vmem:[%s0 + $0x178] sm:$0xff]
    %v63 = vld [vmem:[%s0 + $0x180] sm:$0xff]
    %v64 = vld [vmem:[%s0 + $0x188] sm:$0xff]
    %v65 = vld [vmem:[%s0 + $0x190] sm:$0xff]
    %v66 = vld [vmem:[%s0 + $0x198] sm:$0xff]
    %v67 = vld [vmem:[%s0 + $0x1a0] sm:$0xff]
    %v68 = vld [vmem:[%s0 + $0x1a8] sm:$0xff]
    %v69 = vld [vmem:[%s0 + $0x1b0] sm:$0xff]
    %v70 = vld [vmem:[%s0 + $0x1b8] sm:$0xff]
    %v71 = vld [vmem:[%s0 + $0x1c0] sm:$0xff]
    %v72 = vld [vmem:[%s0 + $0x1c8] sm:$0xff]
    %v73 = vld [vmem:[%s0 + $0x1d0] sm:$0xff]
    %v74 = vld [vmem:[%s0 + $0x1d8] sm:$0xff]
    %v75 = vld [vmem:[%s0 + $0x1e0] sm:$0xff]
    %v76 = vld [vmem:[%s0 + $0x1e8] sm:$0xff]
    %v77 = vld [vmem:[%s0 + $0x1f0] sm:$0xff]
    %v78 = vld [vmem:[%s0 + $0x1f8] sm:$0xff]
    %v79 = vld [vmem:[%s1] sm:$0xff]
    %v80 = vld [vmem:[%s1 + $0x8] sm:$0xff]
    %v81 = vld [vmem:[%s1 + $0x10] sm:$0xff]
    %v82 = vld [vmem:[%s1 + $0x18] sm:$0xff]
    %v83 = vld [vmem:[%s1 + $0x20] sm:$0xff]
    %v84 = vld [vmem:[%s1 + $0x28] sm:$0xff]
    %v85 = vld [vmem:[%s1 + $0x30] sm:$0xff]
    %v86 = vld [vmem:[%s1 + $0x38] sm:$0xff]
    %v87 = vld [vmem:[%s1 + $0x40] sm:$0xff]
    %v88 = vld [vmem:[%s1 + $0x48] sm:$0xff]
    %v89 = vld [vmem:[%s1 + $0x50] sm:$0xff]
    %v90 = vld [vmem:[%s1 + $0x58] sm:$0xff]
    %v91 = vld [vmem:[%s1 + $0x60] sm:$0xff]
    %v92 = vld [vmem:[%s1 + $0x68] sm:$0xff]
    %v93 = vld [vmem:[%s1 + $0x70] sm:$0xff]
    %v94 = vld [vmem:[%s1 + $0x78] sm:$0xff]
    %v95 = vld [vmem:[%s1 + $0x80] sm:$0xff]
    %v96 = vld [vmem:[%s1 + $0x88] sm:$0xff]
    %v97 = vld [vmem:[%s1 + $0x90] sm:$0xff]
    %v98 = vld [vmem:[%s1 + $0x98] sm:$0xff]
    %v99 = vld [vmem:[%s1 + $0xa0] sm:$0xff]
    %v100 = vld [vmem:[%s1 + $0xa8] sm:$0xff]
    %v101 = vld [vmem:[%s1 + $0xb0] sm:$0xff]
    %v102 = vld [vmem:[%s1 + $0xb8] sm:$0xff]
    %v103 = vld [vmem:[%s1 + $0xc0] sm:$0xff]
    %v104 = vld [vmem:[%s1 + $0xc8] sm:$0xff]
    %v105 = vld [vmem:[%s1 + $0xd0] sm:$0xff]
    %v106 = vld [vmem:[%s1 + $0xd8] sm:$0xff]
    %v107 = vld [vmem:[%s1 + $0xe0] sm:$0xff]
    %v108 = vld [vmem:[%s1 + $0xe8] sm:$0xff]
    %v109 = vld [vmem:[%s1 + $0xf0] sm:$0xff]
    %v110 = vld [vmem:[%s1 + $0xf8] sm:$0xff]
    %v111 = vld [vmem:[%s1 + $0x100] sm:$0xff]
    %v112 = vld [vmem:[%s1 + $0x108] sm:$0xff]
    %v113 = vld [vmem:[%s1 + $0x110] sm:$0xff]
    %v114 = vld [vmem:[%s1 + $0x118] sm:$0xff]
    %v115 = vld [vmem:[%s1 + $0x120] sm:$0xff]
    %v116 = vld [vmem:[%s1 + $0x128] sm:$0xff]
    %v117 = vld [vmem:[%s1 + $0x130] sm:$0xff]
    %v118 = vld [vmem:[%s1 + $0x138] sm:$0xff]
    %v119 = vld [vmem:[%s1 + $0x140] sm:$0xff]
    %v120 = vld [vmem:[%s1 + $0x148] sm:$0xff]
    %v121 = vld [vmem:[%s1 + $0x150] sm:$0xff]
    %v122 = vld [vmem:[%s1 + $0x158] sm:$0xff]
    %v123 = vld [vmem:[%s1 + $0x160] sm:$0xff]
    %v124 = vld [vmem:[%s1 + $0x168] sm:$0xff]
    %v125 = vld [vmem:[%s1 + $0x170] sm:$0xff]
    %v126 = vld [vmem:[%s1 + $0x178] sm:$0xff]
    %v127 = vld [vmem:[%s1 + $0x180] sm:$0xff]
    %v128 = vld [vmem:[%s1 + $0x188] sm:$0xff]
    %v129 = vld [vmem:[%s1 + $0x190] sm:$0xff]
    %v130 = vld [vmem:[%s1 + $0x198] sm:$0xff]
    %v131 = vld [vmem:[%s1 + $0x1a0] sm:$0xff]
    %v132 = vld [vmem:[%s1 + $0x1a8] sm:$0xff]
    %v133 = vld [vmem:[%s1 + $0x1b0] sm:$0xff]
    %v134 = vld [vmem:[%s1 + $0x1b8] sm:$0xff]
    %v135 = vld [vmem:[%s1 + $0x1c0] sm:$0xff]
    %v136 = vld [vmem:[%s1 + $0x1c8] sm:$0xff]
    %v137 = vld [vmem:[%s1 + $0x1d0] sm:$0xff]
    %v138 = vld [vmem:[%s1 + $0x1d8] sm:$0xff]
    %v139 = vld [vmem:[%s1 + $0x1e0] sm:$0xff]
    %v140 = vld [vmem:[%s1 + $0x1e8] sm:$0xff]
    %v141 = vld [vmem:[%s1 + $0x1f0] sm:$0xff]
    %v142 = vld [vmem:[%s1 + $0x1f8] sm:$0xff]
    %v143 = vld [vmem:[%s2] sm:$0xff]
    %v144 = vld [vmem:[%s2 + $0x8] sm:$0xff]
    %v145 = vld [vmem:[%s2 + $0x10] sm:$0xff]
    %v146 = vld [vmem:[%s2 + $0x18] sm:$0xff]
    %v147 = vld [vmem:[%s2 + $0x20] sm:$0xff]
    %v148 = vld [vmem:[%s2 + $0x28] sm:$0xff]
    %v149 = vld [vmem:[%s2 + $0x30] sm:$0xff]
    %v150 = vld [vmem:[%s2 + $0x38] sm:$0xff]
    %v151 = vld [vmem:[%s2 + $0x40] sm:$0xff]
    %v152 = vld [vmem:[%s2 + $0x48] sm:$0xff]
    %v153 = vld [vmem:[%s2 + $0x50] sm:$0xff]
    %v154 = vld [vmem:[%s2 + $0x58] sm:$0xff]
    %v155 = vld [vmem:[%s2 + $0x60] sm:$0xff]
    %v156 = vld [vmem:[%s2 + $0x68] sm:$0xff]
    %v157 = vld [vmem:[%s2 + $0x70] sm:$0xff]
    %v158 = vld [vmem:[%s2 + $0x78] sm:$0xff]
    %v159 = vld [vmem:[%s2 + $0x80] sm:$0xff]
    %v160 = vld [vmem:[%s2 + $0x88] sm:$0xff]
    %v161 = vld [vmem:[%s2 + $0x90] sm:$0xff]
    %v162 = vld [vmem:[%s2 + $0x98] sm:$0xff]
    %v163 = vld [vmem:[%s2 + $0xa0] sm:$0xff]
    %v164 = vld [vmem:[%s2 + $0xa8] sm:$0xff]
    %v165 = vld [vmem:[%s2 + $0xb0] sm:$0xff]
    %v166 = vld [vmem:[%s2 + $0xb8] sm:$0xff]
    %v167 = vld [vmem:[%s2 + $0xc0] sm:$0xff]
    %v168 = vld [vmem:[%s2 + $0xc8] sm:$0xff]
    %v169 = vld [vmem:[%s2 + $0xd0] sm:$0xff]
    %v170 = vld [vmem:[%s2 + $0xd8] sm:$0xff]
    %v171 = vld [vmem:[%s2 + $0xe0] sm:$0xff]
    %v172 = vld [vmem:[%s2 + $0xe8] sm:$0xff]
    %v173 = vld [vmem:[%s2 + $0xf0] sm:$0xff]
    %v174 = vld [vmem:[%s2 + $0xf8] sm:$0xff]
    %v175 = vld [vmem:[%s2 + $0x100] sm:$0xff]
    %v176 = vld [vmem:[%s2 + $0x108] sm:$0xff]
    %v177 = vld [vmem:[%s2 + $0x110] sm:$0xff]
    %v178 = vld [vmem:[%s2 + $0x118] sm:$0xff]
    %v179 = vld [vmem:[%s2 + $0x120] sm:$0xff]
    %v180 = vld [vmem:[%s2 + $0x128] sm:$0xff]
    %v181 = vld [vmem:[%s2 + $0x130] sm:$0xff]
    %v182 = vld [vmem:[%s2 + $0x138] sm:$0xff]
    %v183 = vld [vmem:[%s2 + $0x140] sm:$0xff]
    %v184 = vld [vmem:[%s2 + $0x148] sm:$0xff]
    %v185 = vld [vmem:[%s2 + $0x150] sm:$0xff]
    %v186 = vld [vmem:[%s2 + $0x158] sm:$0xff]
    %v187 = vld [vmem:[%s2 + $0x160] sm:$0xff]
    %v188 = vld [vmem:[%s2 + $0x168] sm:$0xff]
    %v189 = vld [vmem:[%s2 + $0x170] sm:$0xff]
    %v190 = vld [vmem:[%s2 + $0x178] sm:$0xff]
    %v191 = vld [vmem:[%s2 + $0x180] sm:$0xff]
    %v192 = vld [vmem:[%s2 + $0x188] sm:$0xff]
    %v193 = vld [vmem:[%s2 + $0x190] sm:$0xff]
    %v194 = vld [vmem:[%s2 + $0x198] sm:$0xff]
    %v195 = vld [vmem:[%s2 + $0x1a0] sm:$0xff]
    %v196 = vld [vmem:[%s2 + $0x1a8] sm:$0xff]
    %v197 = vld [vmem:[%s2 + $0x1b0] sm:$0xff]
    %v198 = vld [vmem:[%s2 + $0x1b8] sm:$0xff]
    %v199 = vld [vmem:[%s2 + $0x1c0] sm:$0xff]
    %v200 = vld [vmem:[%s2 + $0x1c8] sm:$0xff]
    %v201 = vld [vmem:[%s2 + $0x1d0] sm:$0xff]
    %v202 = vld [vmem:[%s2 + $0x1d8] sm:$0xff]
    %v203 = vld [vmem:[%s2 + $0x1e0] sm:$0xff]
    %v204 = vld [vmem:[%s2 + $0x1e8] sm:$0xff]
    %v205 = vld [vmem:[%s2 + $0x1f0] sm:$0xff]
    %v206 = vld [vmem:[%s2 + $0x1f8] sm:$0xff]
    %vm207 = vcmask 261120
    %v209 = vsel %vm207, %v15, 0
    %v212 = vsel %vm207, %v16, 0
    %v215 = vsel %vm207, %v17, 0
    %v218 = vsel %vm207, %v18, 0
    %v221 = vsel %vm207, %v19, 0
    %v224 = vsel %vm207, %v20, 0
    %v227 = vsel %vm207, %v21, 0
    %v230 = vsel %vm207, %v22, 0
    %v233 = vsel %vm207, %v79, 0
    %v236 = vsel %vm207, %v80, 0
    %v239 = vsel %vm207, %v81, 0
    %v242 = vsel %vm207, %v82, 0
    %v245 = vsel %vm207, %v83, 0
    %v248 = vsel %vm207, %v84, 0
    %v251 = vsel %vm207, %v85, 0
    %v254 = vsel %vm207, %v86, 0
    %256 = vmatprep.subr.mxu0 0.0
    %257 = vmatpush1.xpose.msra.mxu0 0.0
    %258 = vmatprep.subr.mxu0 0.0
    %259 = vmatpush1.xpose.msra.mxu0 0.0
    %260 = vmatprep.subr.mxu0 0.0
    %261 = vmatpush1.xpose.msra.mxu0 0.0
    %262 = vmatprep.subr.mxu0 0.0
    %263 = vmatpush1.xpose.msra.mxu0 0.0
    %264 = vmatprep.subr.mxu0 0.0
    %265 = vmatpush1.xpose.msra.mxu0 0.0
    %266 = vmatprep.subr.mxu0 0.0
    %267 = vmatpush1.xpose.msra.mxu0 0.0
    %268 = vmatprep.subr.mxu0 0.0
    %269 = vmatpush1.xpose.msra.mxu0 0.0
    %270 = vmatprep.subr.mxu0 0.0
    %271 = vmatpush1.xpose.msra.mxu0 0.0
    %272 = vmatprep.subr.mxu0 0.0
    %273 = vmatpush1.xpose.msra.mxu0 %v254
    %274 = vmatprep.subr.mxu0 0.0
    %275 = vmatpush1.xpose.msra.mxu0 %v251
    %276 = vmatprep.subr.mxu0 0.0
    %277 = vmatpush1.xpose.msra.mxu0 %v248
    %278 = vmatprep.subr.mxu0 0.0
    %279 = vmatpush1.xpose.msra.mxu0 %v245
    %280 = vmatprep.subr.mxu0 0.0
    %281 = vmatpush1.xpose.msra.mxu0 %v242
    %282 = vmatprep.subr.mxu0 0.0
    %283 = vmatpush1.xpose.msra.mxu0 %v239
    %284 = vmatprep.subr.mxu0 0.0
    %285 = vmatpush1.xpose.msra.mxu0 %v236
    %286 = vmatprep.subr.mxu0 0.0
    %287 = vmatpush1.xpose.msra.mxu0 %v233
    %288 = vmatprep.subr.mxu0 0.0
    %289 = vmatpush2.xpose.msra.mxu0 0.0
    %290 = vmatprep.subr.mxu0 0.0
    %291 = vmatpush2.xpose.msra.mxu0 0.0
    %292 = vmatprep.subr.mxu0 0.0
    %293 = vmatpush2.xpose.msra.mxu0 0.0
    %294 = vmatprep.subr.mxu0 0.0
    %295 = vmatpush2.xpose.msra.mxu0 0.0
    %296 = vmatprep.subr.mxu0 0.0
    %297 = vmatpush2.xpose.msra.mxu0 0.0
    %298 = vmatprep.subr.mxu0 0.0
    %299 = vmatpush2.xpose.msra.mxu0 0.0
    %300 = vmatprep.subr.mxu0 0.0
    %301 = vmatpush2.xpose.msra.mxu0 0.0
    %302 = vmatprep.subr.mxu0 0.0
    %303 = vmatpush2.xpose.msra.mxu0 0.0
    %304 = vmatprep.subr.mxu0 0.0
    %305 = vmatpush2.xpose.msra.mxu0 0.0
    %306 = vmatprep.subr.mxu0 0.0
    %307 = vmatpush2.xpose.msra.mxu0 0.0
    %308 = vmatprep.subr.mxu0 0.0
    %309 = vmatpush2.xpose.msra.mxu0 0.0
    %310 = vmatprep.subr.mxu0 0.0
    %311 = vmatpush2.xpose.msra.mxu0 0.0
    %312 = vmatprep.subr.mxu0 0.0
    %313 = vmatpush2.xpose.msra.mxu0 0.0
    %314 = vmatprep.subr.mxu0 0.0
    %315 = vmatpush2.xpose.msra.mxu0 0.0
    %316 = vmatprep.subr.mxu0 0.0
    %317 = vmatpush2.xpose.msra.mxu0 0.0
    %318 = vmatprep.subr.mxu0 0.0
    %319 = vmatpush2.xpose.msra.mxu0 0.0
    %320 = vmatprep.mubr.f32.mxu0 0.0
    %321 = vmatmul.mubr.f32.gmra.mxu0 %v209
    %v322 = vpop.f32.mrf.mxu0
    %v323 = vadd.f32 0.0, %v322
    %v324 = vpop.f32.mrf.mxu0
    %325 = vmatprep.mubr.f32.mxu0 0.0
    %326 = vmatmul.mubr.f32.gmra.mxu0 %v212
    %v327 = vpop.f32.mrf.mxu0
    %v328 = vadd.f32 0.0, %v327
    %v329 = vpop.f32.mrf.mxu0
    %330 = vmatprep.mubr.f32.mxu0 0.0
    %331 = vmatmul.mubr.f32.gmra.mxu0 %v215
    %v332 = vpop.f32.mrf.mxu0
    %v333 = vadd.f32 0.0, %v332
    %v334 = vpop.f32.mrf.mxu0
    %335 = vmatprep.mubr.f32.mxu0 0.0
    %336 = vmatmul.mubr.f32.gmra.mxu0 %v218
    %v337 = vpop.f32.mrf.mxu0
    %v338 = vadd.f32 0.0, %v337
    %v339 = vpop.f32.mrf.mxu0
    %340 = vmatprep.mubr.f32.mxu0 0.0
    %341 = vmatmul.mubr.f32.gmra.mxu0 %v221
    %v342 = vpop.f32.mrf.mxu0
    %v343 = vadd.f32 0.0, %v342
    %v344 = vpop.f32.mrf.mxu0
    %345 = vmatprep.mubr.f32.mxu0 0.0
    %346 = vmatmul.mubr.f32.gmra.mxu0 %v224
    %v347 = vpop.f32.mrf.mxu0
    %v348 = vadd.f32 0.0, %v347
    %v349 = vpop.f32.mrf.mxu0
    %350 = vmatprep.mubr.f32.mxu0 0.0
    %351 = vmatmul.mubr.f32.gmra.mxu0 %v227
    %v352 = vpop.f32.mrf.mxu0
    %v353 = vadd.f32 0.0, %v352
    %v354 = vpop.f32.mrf.mxu0
    %355 = vmatprep.mubr.f32.mxu0 0.0
    %356 = vmatmul.mubr.f32.gmra.mxu0 %v230
    %v357 = vpop.f32.mrf.mxu0
    %v358 = vadd.f32 0.0, %v357
    %v359 = vpop.f32.mrf.mxu0
    %360 = vdwg.mxu0
    %v362 = vsel %vm207, %v23, 0
    %v365 = vsel %vm207, %v24, 0
    %v368 = vsel %vm207, %v25, 0
    %v371 = vsel %vm207, %v26, 0
    %v374 = vsel %vm207, %v27, 0
    %v377 = vsel %vm207, %v28, 0
    %v380 = vsel %vm207, %v29, 0
    %v383 = vsel %vm207, %v30, 0
    %v386 = vsel %vm207, %v87, 0
    %v389 = vsel %vm207, %v88, 0
    %v392 = vsel %vm207, %v89, 0
    %v395 = vsel %vm207, %v90, 0
    %v398 = vsel %vm207, %v91, 0
    %v401 = vsel %vm207, %v92, 0
    %v404 = vsel %vm207, %v93, 0
    %v407 = vsel %vm207, %v94, 0
    %409 = vmatprep.subr.mxu0 0.0
    %410 = vmatpush1.xpose.msra.mxu0 0.0
    %411 = vmatprep.subr.mxu0 0.0
    %412 = vmatpush1.xpose.msra.mxu0 0.0
    %413 = vmatprep.subr.mxu0 0.0
    %414 = vmatpush1.xpose.msra.mxu0 0.0
    %415 = vmatprep.subr.mxu0 0.0
    %416 = vmatpush1.xpose.msra.mxu0 0.0
    %417 = vmatprep.subr.mxu0 0.0
    %418 = vmatpush1.xpose.msra.mxu0 0.0
    %419 = vmatprep.subr.mxu0 0.0
    %420 = vmatpush1.xpose.msra.mxu0 0.0
    %421 = vmatprep.subr.mxu0 0.0
    %422 = vmatpush1.xpose.msra.mxu0 0.0
    %423 = vmatprep.subr.mxu0 0.0
    %424 = vmatpush1.xpose.msra.mxu0 0.0
    %425 = vmatprep.subr.mxu0 0.0
    %426 = vmatpush1.xpose.msra.mxu0 %v407
    %427 = vmatprep.subr.mxu0 0.0
    %428 = vmatpush1.xpose.msra.mxu0 %v404
    %429 = vmatprep.subr.mxu0 0.0
    %430 = vmatpush1.xpose.msra.mxu0 %v401
    %431 = vmatprep.subr.mxu0 0.0
    %432 = vmatpush1.xpose.msra.mxu0 %v398
    %433 = vmatprep.subr.mxu0 0.0
    %434 = vmatpush1.xpose.msra.mxu0 %v395
    %435 = vmatprep.subr.mxu0 0.0
    %436 = vmatpush1.xpose.msra.mxu0 %v392
    %437 = vmatprep.subr.mxu0 0.0
    %438 = vmatpush1.xpose.msra.mxu0 %v389
    %439 = vmatprep.subr.mxu0 0.0
    %440 = vmatpush1.xpose.msra.mxu0 %v386
    %441 = vmatprep.subr.mxu0 0.0
    %442 = vmatpush2.xpose.msra.mxu0 0.0
    %443 = vmatprep.subr.mxu0 0.0
    %444 = vmatpush2.xpose.msra.mxu0 0.0
    %445 = vmatprep.subr.mxu0 0.0
    %446 = vmatpush2.xpose.msra.mxu0 0.0
    %447 = vmatprep.subr.mxu0 0.0
    %448 = vmatpush2.xpose.msra.mxu0 0.0
    %449 = vmatprep.subr.mxu0 0.0
    %450 = vmatpush2.xpose.msra.mxu0 0.0
    %451 = vmatprep.subr.mxu0 0.0
    %452 = vmatpush2.xpose.msra.mxu0 0.0
    %453 = vmatprep.subr.mxu0 0.0
    %454 = vmatpush2.xpose.msra.mxu0 0.0
    %455 = vmatprep.subr.mxu0 0.0
    %456 = vmatpush2.xpose.msra.mxu0 0.0
    %457 = vmatprep.subr.mxu0 0.0
    %458 = vmatpush2.xpose.msra.mxu0 0.0
    %459 = vmatprep.subr.mxu0 0.0
    %460 = vmatpush2.xpose.msra.mxu0 0.0
    %461 = vmatprep.subr.mxu0 0.0
    %462 = vmatpush2.xpose.msra.mxu0 0.0
    %463 = vmatprep.subr.mxu0 0.0
    %464 = vmatpush2.xpose.msra.mxu0 0.0
    %465 = vmatprep.subr.mxu0 0.0
    %466 = vmatpush2.xpose.msra.mxu0 0.0
    %467 = vmatprep.subr.mxu0 0.0
    %468 = vmatpush2.xpose.msra.mxu0 0.0
    %469 = vmatprep.subr.mxu0 0.0
    %470 = vmatpush2.xpose.msra.mxu0 0.0
    %471 = vmatprep.subr.mxu0 0.0
    %472 = vmatpush2.xpose.msra.mxu0 0.0
    %473 = vmatprep.mubr.f32.mxu0 0.0
    %474 = vmatmul.mubr.f32.gmra.mxu0 %v362
    %v475 = vpop.f32.mrf.mxu0
    %v476 = vadd.f32 0.0, %v475
    %v477 = vpop.f32.mrf.mxu0
    %478 = vmatprep.mubr.f32.mxu0 0.0
    %479 = vmatmul.mubr.f32.gmra.mxu0 %v365
    %v480 = vpop.f32.mrf.mxu0
    %v481 = vadd.f32 0.0, %v480
    %v482 = vpop.f32.mrf.mxu0
    %483 = vmatprep.mubr.f32.mxu0 0.0
    %484 = vmatmul.mubr.f32.gmra.mxu0 %v368
    %v485 = vpop.f32.mrf.mxu0
    %v486 = vadd.f32 0.0, %v485
    %v487 = vpop.f32.mrf.mxu0
    %488 = vmatprep.mubr.f32.mxu0 0.0
    %489 = vmatmul.mubr.f32.gmra.mxu0 %v371
    %v490 = vpop.f32.mrf.mxu0
    %v491 = vadd.f32 0.0, %v490
    %v492 = vpop.f32.mrf.mxu0
    %493 = vmatprep.mubr.f32.mxu0 0.0
    %494 = vmatmul.mubr.f32.gmra.mxu0 %v374
    %v495 = vpop.f32.mrf.mxu0
    %v496 = vadd.f32 0.0, %v495
    %v497 = vpop.f32.mrf.mxu0
    %498 = vmatprep.mubr.f32.mxu0 0.0
    %499 = vmatmul.mubr.f32.gmra.mxu0 %v377
    %v500 = vpop.f32.mrf.mxu0
    %v501 = vadd.f32 0.0, %v500
    %v502 = vpop.f32.mrf.mxu0
    %503 = vmatprep.mubr.f32.mxu0 0.0
    %504 = vmatmul.mubr.f32.gmra.mxu0 %v380
    %v505 = vpop.f32.mrf.mxu0
    %v506 = vadd.f32 0.0, %v505
    %v507 = vpop.f32.mrf.mxu0
    %508 = vmatprep.mubr.f32.mxu0 0.0
    %509 = vmatmul.mubr.f32.gmra.mxu0 %v383
    %v510 = vpop.f32.mrf.mxu0
    %v511 = vadd.f32 0.0, %v510
    %v512 = vpop.f32.mrf.mxu0
    %513 = vdwg.mxu0
    %v515 = vsel %vm207, %v31, 0
    %v518 = vsel %vm207, %v32, 0
    %v521 = vsel %vm207, %v33, 0
    %v524 = vsel %vm207, %v34, 0
    %v527 = vsel %vm207, %v35, 0
    %v530 = vsel %vm207, %v36, 0
    %v533 = vsel %vm207, %v37, 0
    %v536 = vsel %vm207, %v38, 0
    %v539 = vsel %vm207, %v95, 0
    %v542 = vsel %vm207, %v96, 0
    %v545 = vsel %vm207, %v97, 0
    %v548 = vsel %vm207, %v98, 0
    %v551 = vsel %vm207, %v99, 0
    %v554 = vsel %vm207, %v100, 0
    %v557 = vsel %vm207, %v101, 0
    %v560 = vsel %vm207, %v102, 0
    %562 = vmatprep.subr.mxu0 0.0
    %563 = vmatpush1.xpose.msra.mxu0 0.0
    %564 = vmatprep.subr.mxu0 0.0
    %565 = vmatpush1.xpose.msra.mxu0 0.0
    %566 = vmatprep.subr.mxu0 0.0
    %567 = vmatpush1.xpose.msra.mxu0 0.0
    %568 = vmatprep.subr.mxu0 0.0
    %569 = vmatpush1.xpose.msra.mxu0 0.0
    %570 = vmatprep.subr.mxu0 0.0
    %571 = vmatpush1.xpose.msra.mxu0 0.0
    %572 = vmatprep.subr.mxu0 0.0
    %573 = vmatpush1.xpose.msra.mxu0 0.0
    %574 = vmatprep.subr.mxu0 0.0
    %575 = vmatpush1.xpose.msra.mxu0 0.0
    %576 = vmatprep.subr.mxu0 0.0
    %577 = vmatpush1.xpose.msra.mxu0 0.0
    %578 = vmatprep.subr.mxu0 0.0
    %579 = vmatpush1.xpose.msra.mxu0 %v560
    %580 = vmatprep.subr.mxu0 0.0
    %581 = vmatpush1.xpose.msra.mxu0 %v557
    %582 = vmatprep.subr.mxu0 0.0
    %583 = vmatpush1.xpose.msra.mxu0 %v554
    %584 = vmatprep.subr.mxu0 0.0
    %585 = vmatpush1.xpose.msra.mxu0 %v551
    %586 = vmatprep.subr.mxu0 0.0
    %587 = vmatpush1.xpose.msra.mxu0 %v548
    %588 = vmatprep.subr.mxu0 0.0
    %589 = vmatpush1.xpose.msra.mxu0 %v545
    %590 = vmatprep.subr.mxu0 0.0
    %591 = vmatpush1.xpose.msra.mxu0 %v542
    %592 = vmatprep.subr.mxu0 0.0
    %593 = vmatpush1.xpose.msra.mxu0 %v539
    %594 = vmatprep.subr.mxu0 0.0
    %595 = vmatpush2.xpose.msra.mxu0 0.0
    %596 = vmatprep.subr.mxu0 0.0
    %597 = vmatpush2.xpose.msra.mxu0 0.0
    %598 = vmatprep.subr.mxu0 0.0
    %599 = vmatpush2.xpose.msra.mxu0 0.0
    %600 = vmatprep.subr.mxu0 0.0
    %601 = vmatpush2.xpose.msra.mxu0 0.0
    %602 = vmatprep.subr.mxu0 0.0
    %603 = vmatpush2.xpose.msra.mxu0 0.0
    %604 = vmatprep.subr.mxu0 0.0
    %605 = vmatpush2.xpose.msra.mxu0 0.0
    %606 = vmatprep.subr.mxu0 0.0
    %607 = vmatpush2.xpose.msra.mxu0 0.0
    %608 = vmatprep.subr.mxu0 0.0
    %609 = vmatpush2.xpose.msra.mxu0 0.0
    %610 = vmatprep.subr.mxu0 0.0
    %611 = vmatpush2.xpose.msra.mxu0 0.0
    %612 = vmatprep.subr.mxu0 0.0
    %613 = vmatpush2.xpose.msra.mxu0 0.0
    %614 = vmatprep.subr.mxu0 0.0
    %615 = vmatpush2.xpose.msra.mxu0 0.0
    %616 = vmatprep.subr.mxu0 0.0
    %617 = vmatpush2.xpose.msra.mxu0 0.0
    %618 = vmatprep.subr.mxu0 0.0
    %619 = vmatpush2.xpose.msra.mxu0 0.0
    %620 = vmatprep.subr.mxu0 0.0
    %621 = vmatpush2.xpose.msra.mxu0 0.0
    %622 = vmatprep.subr.mxu0 0.0
    %623 = vmatpush2.xpose.msra.mxu0 0.0
    %624 = vmatprep.subr.mxu0 0.0
    %625 = vmatpush2.xpose.msra.mxu0 0.0
    %626 = vmatprep.mubr.f32.mxu0 0.0
    %627 = vmatmul.mubr.f32.gmra.mxu0 %v515
    %v628 = vpop.f32.mrf.mxu0
    %v629 = vadd.f32 0.0, %v628
    %v630 = vpop.f32.mrf.mxu0
    %631 = vmatprep.mubr.f32.mxu0 0.0
    %632 = vmatmul.mubr.f32.gmra.mxu0 %v518
    %v633 = vpop.f32.mrf.mxu0
    %v634 = vadd.f32 0.0, %v633
    %v635 = vpop.f32.mrf.mxu0
    %636 = vmatprep.mubr.f32.mxu0 0.0
    %637 = vmatmul.mubr.f32.gmra.mxu0 %v521
    %v638 = vpop.f32.mrf.mxu0
    %v639 = vadd.f32 0.0, %v638
    %v640 = vpop.f32.mrf.mxu0
    %641 = vmatprep.mubr.f32.mxu0 0.0
    %642 = vmatmul.mubr.f32.gmra.mxu0 %v524
    %v643 = vpop.f32.mrf.mxu0
    %v644 = vadd.f32 0.0, %v643
    %v645 = vpop.f32.mrf.mxu0
    %646 = vmatprep.mubr.f32.mxu0 0.0
    %647 = vmatmul.mubr.f32.gmra.mxu0 %v527
    %v648 = vpop.f32.mrf.mxu0
    %v649 = vadd.f32 0.0, %v648
    %v650 = vpop.f32.mrf.mxu0
    %651 = vmatprep.mubr.f32.mxu0 0.0
    %652 = vmatmul.mubr.f32.gmra.mxu0 %v530
    %v653 = vpop.f32.mrf.mxu0
    %v654 = vadd.f32 0.0, %v653
    %v655 = vpop.f32.mrf.mxu0
    %656 = vmatprep.mubr.f32.mxu0 0.0
    %657 = vmatmul.mubr.f32.gmra.mxu0 %v533
    %v658 = vpop.f32.mrf.mxu0
    %v659 = vadd.f32 0.0, %v658
    %v660 = vpop.f32.mrf.mxu0
    %661 = vmatprep.mubr.f32.mxu0 0.0
    %662 = vmatmul.mubr.f32.gmra.mxu0 %v536
    %v663 = vpop.f32.mrf.mxu0
    %v664 = vadd.f32 0.0, %v663
    %v665 = vpop.f32.mrf.mxu0
    %666 = vdwg.mxu0
    %v668 = vsel %vm207, %v39, 0
    %v671 = vsel %vm207, %v40, 0
    %v674 = vsel %vm207, %v41, 0
    %v677 = vsel %vm207, %v42, 0
    %v680 = vsel %vm207, %v43, 0
    %v683 = vsel %vm207, %v44, 0
    %v686 = vsel %vm207, %v45, 0
    %v689 = vsel %vm207, %v46, 0
    %v692 = vsel %vm207, %v103, 0
    %v695 = vsel %vm207, %v104, 0
    %v698 = vsel %vm207, %v105, 0
    %v701 = vsel %vm207, %v106, 0
    %v704 = vsel %vm207, %v107, 0
    %v707 = vsel %vm207, %v108, 0
    %v710 = vsel %vm207, %v109, 0
    %v713 = vsel %vm207, %v110, 0
    %715 = vmatprep.subr.mxu0 0.0
    %716 = vmatpush1.xpose.msra.mxu0 0.0
    %717 = vmatprep.subr.mxu0 0.0
    %718 = vmatpush1.xpose.msra.mxu0 0.0
    %719 = vmatprep.subr.mxu0 0.0
    %720 = vmatpush1.xpose.msra.mxu0 0.0
    %721 = vmatprep.subr.mxu0 0.0
    %722 = vmatpush1.xpose.msra.mxu0 0.0
    %723 = vmatprep.subr.mxu0 0.0
    %724 = vmatpush1.xpose.msra.mxu0 0.0
    %725 = vmatprep.subr.mxu0 0.0
    %726 = vmatpush1.xpose.msra.mxu0 0.0
    %727 = vmatprep.subr.mxu0 0.0
    %728 = vmatpush1.xpose.msra.mxu0 0.0
    %729 = vmatprep.subr.mxu0 0.0
    %730 = vmatpush1.xpose.msra.mxu0 0.0
    %731 = vmatprep.subr.mxu0 0.0
    %732 = vmatpush1.xpose.msra.mxu0 %v713
    %733 = vmatprep.subr.mxu0 0.0
    %734 = vmatpush1.xpose.msra.mxu0 %v710
    %735 = vmatprep.subr.mxu0 0.0
    %736 = vmatpush1.xpose.msra.mxu0 %v707
    %737 = vmatprep.subr.mxu0 0.0
    %738 = vmatpush1.xpose.msra.mxu0 %v704
    %739 = vmatprep.subr.mxu0 0.0
    %740 = vmatpush1.xpose.msra.mxu0 %v701
    %741 = vmatprep.subr.mxu0 0.0
    %742 = vmatpush1.xpose.msra.mxu0 %v698
    %743 = vmatprep.subr.mxu0 0.0
    %744 = vmatpush1.xpose.msra.mxu0 %v695
    %745 = vmatprep.subr.mxu0 0.0
    %746 = vmatpush1.xpose.msra.mxu0 %v692
    %747 = vmatprep.subr.mxu0 0.0
    %748 = vmatpush2.xpose.msra.mxu0 0.0
    %749 = vmatprep.subr.mxu0 0.0
    %750 = vmatpush2.xpose.msra.mxu0 0.0
    %751 = vmatprep.subr.mxu0 0.0
    %752 = vmatpush2.xpose.msra.mxu0 0.0
    %753 = vmatprep.subr.mxu0 0.0
    %754 = vmatpush2.xpose.msra.mxu0 0.0
    %755 = vmatprep.subr.mxu0 0.0
    %756 = vmatpush2.xpose.msra.mxu0 0.0
    %757 = vmatprep.subr.mxu0 0.0
    %758 = vmatpush2.xpose.msra.mxu0 0.0
    %759 = vmatprep.subr.mxu0 0.0
    %760 = vmatpush2.xpose.msra.mxu0 0.0
    %761 = vmatprep.subr.mxu0 0.0
    %762 = vmatpush2.xpose.msra.mxu0 0.0
    %763 = vmatprep.subr.mxu0 0.0
    %764 = vmatpush2.xpose.msra.mxu0 0.0
    %765 = vmatprep.subr.mxu0 0.0
    %766 = vmatpush2.xpose.msra.mxu0 0.0
    %767 = vmatprep.subr.mxu0 0.0
    %768 = vmatpush2.xpose.msra.mxu0 0.0
    %769 = vmatprep.subr.mxu0 0.0
    %770 = vmatpush2.xpose.msra.mxu0 0.0
    %771 = vmatprep.subr.mxu0 0.0
    %772 = vmatpush2.xpose.msra.mxu0 0.0
    %773 = vmatprep.subr.mxu0 0.0
    %774 = vmatpush2.xpose.msra.mxu0 0.0
    %775 = vmatprep.subr.mxu0 0.0
    %776 = vmatpush2.xpose.msra.mxu0 0.0
    %777 = vmatprep.subr.mxu0 0.0
    %778 = vmatpush2.xpose.msra.mxu0 0.0
    %779 = vmatprep.mubr.f32.mxu0 0.0
    %780 = vmatmul.mubr.f32.gmra.mxu0 %v668
    %v781 = vpop.f32.mrf.mxu0
    %v782 = vadd.f32 0.0, %v781
    %v783 = vpop.f32.mrf.mxu0
    %784 = vmatprep.mubr.f32.mxu0 0.0
    %785 = vmatmul.mubr.f32.gmra.mxu0 %v671
    %v786 = vpop.f32.mrf.mxu0
    %v787 = vadd.f32 0.0, %v786
    %v788 = vpop.f32.mrf.mxu0
    %789 = vmatprep.mubr.f32.mxu0 0.0
    %790 = vmatmul.mubr.f32.gmra.mxu0 %v674
    %v791 = vpop.f32.mrf.mxu0
    %v792 = vadd.f32 0.0, %v791
    %v793 = vpop.f32.mrf.mxu0
    %794 = vmatprep.mubr.f32.mxu0 0.0
    %795 = vmatmul.mubr.f32.gmra.mxu0 %v677
    %v796 = vpop.f32.mrf.mxu0
    %v797 = vadd.f32 0.0, %v796
    %v798 = vpop.f32.mrf.mxu0
    %799 = vmatprep.mubr.f32.mxu0 0.0
    %800 = vmatmul.mubr.f32.gmra.mxu0 %v680
    %v801 = vpop.f32.mrf.mxu0
    %v802 = vadd.f32 0.0, %v801
    %v803 = vpop.f32.mrf.mxu0
    %804 = vmatprep.mubr.f32.mxu0 0.0
    %805 = vmatmul.mubr.f32.gmra.mxu0 %v683
    %v806 = vpop.f32.mrf.mxu0
    %v807 = vadd.f32 0.0, %v806
    %v808 = vpop.f32.mrf.mxu0
    %809 = vmatprep.mubr.f32.mxu0 0.0
    %810 = vmatmul.mubr.f32.gmra.mxu0 %v686
    %v811 = vpop.f32.mrf.mxu0
    %v812 = vadd.f32 0.0, %v811
    %v813 = vpop.f32.mrf.mxu0
    %814 = vmatprep.mubr.f32.mxu0 0.0
    %815 = vmatmul.mubr.f32.gmra.mxu0 %v689
    %v816 = vpop.f32.mrf.mxu0
    %v817 = vadd.f32 0.0, %v816
    %v818 = vpop.f32.mrf.mxu0
    %819 = vdwg.mxu0
    %v821 = vsel %vm207, %v47, 0
    %v824 = vsel %vm207, %v48, 0
    %v827 = vsel %vm207, %v49, 0
    %v830 = vsel %vm207, %v50, 0
    %v833 = vsel %vm207, %v51, 0
    %v836 = vsel %vm207, %v52, 0
    %v839 = vsel %vm207, %v53, 0
    %v842 = vsel %vm207, %v54, 0
    %v845 = vsel %vm207, %v111, 0
    %v848 = vsel %vm207, %v112, 0
    %v851 = vsel %vm207, %v113, 0
    %v854 = vsel %vm207, %v114, 0
    %v857 = vsel %vm207, %v115, 0
    %v860 = vsel %vm207, %v116, 0
    %v863 = vsel %vm207, %v117, 0
    %v866 = vsel %vm207, %v118, 0
    %868 = vmatprep.subr.mxu0 0.0
    %869 = vmatpush1.xpose.msra.mxu0 0.0
    %870 = vmatprep.subr.mxu0 0.0
    %871 = vmatpush1.xpose.msra.mxu0 0.0
    %872 = vmatprep.subr.mxu0 0.0
    %873 = vmatpush1.xpose.msra.mxu0 0.0
    %874 = vmatprep.subr.mxu0 0.0
    %875 = vmatpush1.xpose.msra.mxu0 0.0
    %876 = vmatprep.subr.mxu0 0.0
    %877 = vmatpush1.xpose.msra.mxu0 0.0
    %878 = vmatprep.subr.mxu0 0.0
    %879 = vmatpush1.xpose.msra.mxu0 0.0
    %880 = vmatprep.subr.mxu0 0.0
    %881 = vmatpush1.xpose.msra.mxu0 0.0
    %882 = vmatprep.subr.mxu0 0.0
    %883 = vmatpush1.xpose.msra.mxu0 0.0
    %884 = vmatprep.subr.mxu0 0.0
    %885 = vmatpush1.xpose.msra.mxu0 %v866
    %886 = vmatprep.subr.mxu0 0.0
    %887 = vmatpush1.xpose.msra.mxu0 %v863
    %888 = vmatprep.subr.mxu0 0.0
    %889 = vmatpush1.xpose.msra.mxu0 %v860
    %890 = vmatprep.subr.mxu0 0.0
    %891 = vmatpush1.xpose.msra.mxu0 %v857
    %892 = vmatprep.subr.mxu0 0.0
    %893 = vmatpush1.xpose.msra.mxu0 %v854
    %894 = vmatprep.subr.mxu0 0.0
    %895 = vmatpush1.xpose.msra.mxu0 %v851
    %896 = vmatprep.subr.mxu0 0.0
    %897 = vmatpush1.xpose.msra.mxu0 %v848
    %898 = vmatprep.subr.mxu0 0.0
    %899 = vmatpush1.xpose.msra.mxu0 %v845
    %900 = vmatprep.subr.mxu0 0.0
    %901 = vmatpush2.xpose.msra.mxu0 0.0
    %902 = vmatprep.subr.mxu0 0.0
    %903 = vmatpush2.xpose.msra.mxu0 0.0
    %904 = vmatprep.subr.mxu0 0.0
    %905 = vmatpush2.xpose.msra.mxu0 0.0
    %906 = vmatprep.subr.mxu0 0.0
    %907 = vmatpush2.xpose.msra.mxu0 0.0
    %908 = vmatprep.subr.mxu0 0.0
    %909 = vmatpush2.xpose.msra.mxu0 0.0
    %910 = vmatprep.subr.mxu0 0.0
    %911 = vmatpush2.xpose.msra.mxu0 0.0
    %912 = vmatprep.subr.mxu0 0.0
    %913 = vmatpush2.xpose.msra.mxu0 0.0
    %914 = vmatprep.subr.mxu0 0.0
    %915 = vmatpush2.xpose.msra.mxu0 0.0
    %916 = vmatprep.subr.mxu0 0.0
    %917 = vmatpush2.xpose.msra.mxu0 0.0
    %918 = vmatprep.subr.mxu0 0.0
    %919 = vmatpush2.xpose.msra.mxu0 0.0
    %920 = vmatprep.subr.mxu0 0.0
    %921 = vmatpush2.xpose.msra.mxu0 0.0
    %922 = vmatprep.subr.mxu0 0.0
    %923 = vmatpush2.xpose.msra.mxu0 0.0
    %924 = vmatprep.subr.mxu0 0.0
    %925 = vmatpush2.xpose.msra.mxu0 0.0
    %926 = vmatprep.subr.mxu0 0.0
    %927 = vmatpush2.xpose.msra.mxu0 0.0
    %928 = vmatprep.subr.mxu0 0.0
    %929 = vmatpush2.xpose.msra.mxu0 0.0
    %930 = vmatprep.subr.mxu0 0.0
    %931 = vmatpush2.xpose.msra.mxu0 0.0
    %932 = vmatprep.mubr.f32.mxu0 0.0
    %933 = vmatmul.mubr.f32.gmra.mxu0 %v821
    %v934 = vpop.f32.mrf.mxu0
    %v935 = vadd.f32 0.0, %v934
    %v936 = vpop.f32.mrf.mxu0
    %937 = vmatprep.mubr.f32.mxu0 0.0
    %938 = vmatmul.mubr.f32.gmra.mxu0 %v824
    %v939 = vpop.f32.mrf.mxu0
    %v940 = vadd.f32 0.0, %v939
    %v941 = vpop.f32.mrf.mxu0
    %942 = vmatprep.mubr.f32.mxu0 0.0
    %943 = vmatmul.mubr.f32.gmra.mxu0 %v827
    %v944 = vpop.f32.mrf.mxu0
    %v945 = vadd.f32 0.0, %v944
    %v946 = vpop.f32.mrf.mxu0
    %947 = vmatprep.mubr.f32.mxu0 0.0
    %948 = vmatmul.mubr.f32.gmra.mxu0 %v830
    %v949 = vpop.f32.mrf.mxu0
    %v950 = vadd.f32 0.0, %v949
    %v951 = vpop.f32.mrf.mxu0
    %952 = vmatprep.mubr.f32.mxu0 0.0
    %953 = vmatmul.mubr.f32.gmra.mxu0 %v833
    %v954 = vpop.f32.mrf.mxu0
    %v955 = vadd.f32 0.0, %v954
    %v956 = vpop.f32.mrf.mxu0
    %957 = vmatprep.mubr.f32.mxu0 0.0
    %958 = vmatmul.mubr.f32.gmra.mxu0 %v836
    %v959 = vpop.f32.mrf.mxu0
    %v960 = vadd.f32 0.0, %v959
    %v961 = vpop.f32.mrf.mxu0
    %962 = vmatprep.mubr.f32.mxu0 0.0
    %963 = vmatmul.mubr.f32.gmra.mxu0 %v839
    %v964 = vpop.f32.mrf.mxu0
    %v965 = vadd.f32 0.0, %v964
    %v966 = vpop.f32.mrf.mxu0
    %967 = vmatprep.mubr.f32.mxu0 0.0
    %968 = vmatmul.mubr.f32.gmra.mxu0 %v842
    %v969 = vpop.f32.mrf.mxu0
    %v970 = vadd.f32 0.0, %v969
    %v971 = vpop.f32.mrf.mxu0
    %972 = vdwg.mxu0
    %v974 = vsel %vm207, %v55, 0
    %v977 = vsel %vm207, %v56, 0
    %v980 = vsel %vm207, %v57, 0
    %v983 = vsel %vm207, %v58, 0
    %v986 = vsel %vm207, %v59, 0
    %v989 = vsel %vm207, %v60, 0
    %v992 = vsel %vm207, %v61, 0
    %v995 = vsel %vm207, %v62, 0
    %v998 = vsel %vm207, %v119, 0
    %v1001 = vsel %vm207, %v120, 0
    %v1004 = vsel %vm207, %v121, 0
    %v1007 = vsel %vm207, %v122, 0
    %v1010 = vsel %vm207, %v123, 0
    %v1013 = vsel %vm207, %v124, 0
    %v1016 = vsel %vm207, %v125, 0
    %v1019 = vsel %vm207, %v126, 0
    %1021 = vmatprep.subr.mxu0 0.0
    %1022 = vmatpush1.xpose.msra.mxu0 0.0
    %1023 = vmatprep.subr.mxu0 0.0
    %1024 = vmatpush1.xpose.msra.mxu0 0.0
    %1025 = vmatprep.subr.mxu0 0.0
    %1026 = vmatpush1.xpose.msra.mxu0 0.0
    %1027 = vmatprep.subr.mxu0 0.0
    %1028 = vmatpush1.xpose.msra.mxu0 0.0
    %1029 = vmatprep.subr.mxu0 0.0
    %1030 = vmatpush1.xpose.msra.mxu0 0.0
    %1031 = vmatprep.subr.mxu0 0.0
    %1032 = vmatpush1.xpose.msra.mxu0 0.0
    %1033 = vmatprep.subr.mxu0 0.0
    %1034 = vmatpush1.xpose.msra.mxu0 0.0
    %1035 = vmatprep.subr.mxu0 0.0
    %1036 = vmatpush1.xpose.msra.mxu0 0.0
    %1037 = vmatprep.subr.mxu0 0.0
    %1038 = vmatpush1.xpose.msra.mxu0 %v1019
    %1039 = vmatprep.subr.mxu0 0.0
    %1040 = vmatpush1.xpose.msra.mxu0 %v1016
    %1041 = vmatprep.subr.mxu0 0.0
    %1042 = vmatpush1.xpose.msra.mxu0 %v1013
    %1043 = vmatprep.subr.mxu0 0.0
    %1044 = vmatpush1.xpose.msra.mxu0 %v1010
    %1045 = vmatprep.subr.mxu0 0.0
    %1046 = vmatpush1.xpose.msra.mxu0 %v1007
    %1047 = vmatprep.subr.mxu0 0.0
    %1048 = vmatpush1.xpose.msra.mxu0 %v1004
    %1049 = vmatprep.subr.mxu0 0.0
    %1050 = vmatpush1.xpose.msra.mxu0 %v1001
    %1051 = vmatprep.subr.mxu0 0.0
    %1052 = vmatpush1.xpose.msra.mxu0 %v998
    %1053 = vmatprep.subr.mxu0 0.0
    %1054 = vmatpush2.xpose.msra.mxu0 0.0
    %1055 = vmatprep.subr.mxu0 0.0
    %1056 = vmatpush2.xpose.msra.mxu0 0.0
    %1057 = vmatprep.subr.mxu0 0.0
    %1058 = vmatpush2.xpose.msra.mxu0 0.0
    %1059 = vmatprep.subr.mxu0 0.0
    %1060 = vmatpush2.xpose.msra.mxu0 0.0
    %1061 = vmatprep.subr.mxu0 0.0
    %1062 = vmatpush2.xpose.msra.mxu0 0.0
    %1063 = vmatprep.subr.mxu0 0.0
    %1064 = vmatpush2.xpose.msra.mxu0 0.0
    %1065 = vmatprep.subr.mxu0 0.0
    %1066 = vmatpush2.xpose.msra.mxu0 0.0
    %1067 = vmatprep.subr.mxu0 0.0
    %1068 = vmatpush2.xpose.msra.mxu0 0.0
    %1069 = vmatprep.subr.mxu0 0.0
    %1070 = vmatpush2.xpose.msra.mxu0 0.0
    %1071 = vmatprep.subr.mxu0 0.0
    %1072 = vmatpush2.xpose.msra.mxu0 0.0
    %1073 = vmatprep.subr.mxu0 0.0
    %1074 = vmatpush2.xpose.msra.mxu0 0.0
    %1075 = vmatprep.subr.mxu0 0.0
    %1076 = vmatpush2.xpose.msra.mxu0 0.0
    %1077 = vmatprep.subr.mxu0 0.0
    %1078 = vmatpush2.xpose.msra.mxu0 0.0
    %1079 = vmatprep.subr.mxu0 0.0
    %1080 = vmatpush2.xpose.msra.mxu0 0.0
    %1081 = vmatprep.subr.mxu0 0.0
    %1082 = vmatpush2.xpose.msra.mxu0 0.0
    %1083 = vmatprep.subr.mxu0 0.0
    %1084 = vmatpush2.xpose.msra.mxu0 0.0
    %1085 = vmatprep.mubr.f32.mxu0 0.0
    %1086 = vmatmul.mubr.f32.gmra.mxu0 %v974
    %v1087 = vpop.f32.mrf.mxu0
    %v1088 = vadd.f32 0.0, %v1087
    %v1089 = vpop.f32.mrf.mxu0
    %1090 = vmatprep.mubr.f32.mxu0 0.0
    %1091 = vmatmul.mubr.f32.gmra.mxu0 %v977
    %v1092 = vpop.f32.mrf.mxu0
    %v1093 = vadd.f32 0.0, %v1092
    %v1094 = vpop.f32.mrf.mxu0
    %1095 = vmatprep.mubr.f32.mxu0 0.0
    %1096 = vmatmul.mubr.f32.gmra.mxu0 %v980
    %v1097 = vpop.f32.mrf.mxu0
    %v1098 = vadd.f32 0.0, %v1097
    %v1099 = vpop.f32.mrf.mxu0
    %1100 = vmatprep.mubr.f32.mxu0 0.0
    %1101 = vmatmul.mubr.f32.gmra.mxu0 %v983
    %v1102 = vpop.f32.mrf.mxu0
    %v1103 = vadd.f32 0.0, %v1102
    %v1104 = vpop.f32.mrf.mxu0
    %1105 = vmatprep.mubr.f32.mxu0 0.0
    %1106 = vmatmul.mubr.f32.gmra.mxu0 %v986
    %v1107 = vpop.f32.mrf.mxu0
    %v1108 = vadd.f32 0.0, %v1107
    %v1109 = vpop.f32.mrf.mxu0
    %1110 = vmatprep.mubr.f32.mxu0 0.0
    %1111 = vmatmul.mubr.f32.gmra.mxu0 %v989
    %v1112 = vpop.f32.mrf.mxu0
    %v1113 = vadd.f32 0.0, %v1112
    %v1114 = vpop.f32.mrf.mxu0
    %1115 = vmatprep.mubr.f32.mxu0 0.0
    %1116 = vmatmul.mubr.f32.gmra.mxu0 %v992
    %v1117 = vpop.f32.mrf.mxu0
    %v1118 = vadd.f32 0.0, %v1117
    %v1119 = vpop.f32.mrf.mxu0
    %1120 = vmatprep.mubr.f32.mxu0 0.0
    %1121 = vmatmul.mubr.f32.gmra.mxu0 %v995
    %v1122 = vpop.f32.mrf.mxu0
    %v1123 = vadd.f32 0.0, %v1122
    %v1124 = vpop.f32.mrf.mxu0
    %1125 = vdwg.mxu0
    %v1127 = vsel %vm207, %v63, 0
    %v1130 = vsel %vm207, %v64, 0
    %v1133 = vsel %vm207, %v65, 0
    %v1136 = vsel %vm207, %v66, 0
    %v1139 = vsel %vm207, %v67, 0
    %v1142 = vsel %vm207, %v68, 0
    %v1145 = vsel %vm207, %v69, 0
    %v1148 = vsel %vm207, %v70, 0
    %v1151 = vsel %vm207, %v127, 0
    %v1154 = vsel %vm207, %v128, 0
    %v1157 = vsel %vm207, %v129, 0
    %v1160 = vsel %vm207, %v130, 0
    %v1163 = vsel %vm207, %v131, 0
    %v1166 = vsel %vm207, %v132, 0
    %v1169 = vsel %vm207, %v133, 0
    %v1172 = vsel %vm207, %v134, 0
    %1174 = vmatprep.subr.mxu0 0.0
    %1175 = vmatpush1.xpose.msra.mxu0 0.0
    %1176 = vmatprep.subr.mxu0 0.0
    %1177 = vmatpush1.xpose.msra.mxu0 0.0
    %1178 = vmatprep.subr.mxu0 0.0
    %1179 = vmatpush1.xpose.msra.mxu0 0.0
    %1180 = vmatprep.subr.mxu0 0.0
    %1181 = vmatpush1.xpose.msra.mxu0 0.0
    %1182 = vmatprep.subr.mxu0 0.0
    %1183 = vmatpush1.xpose.msra.mxu0 0.0
    %1184 = vmatprep.subr.mxu0 0.0
    %1185 = vmatpush1.xpose.msra.mxu0 0.0
    %1186 = vmatprep.subr.mxu0 0.0
    %1187 = vmatpush1.xpose.msra.mxu0 0.0
    %1188 = vmatprep.subr.mxu0 0.0
    %1189 = vmatpush1.xpose.msra.mxu0 0.0
    %1190 = vmatprep.subr.mxu0 0.0
    %1191 = vmatpush1.xpose.msra.mxu0 %v1172
    %1192 = vmatprep.subr.mxu0 0.0
    %1193 = vmatpush1.xpose.msra.mxu0 %v1169
    %1194 = vmatprep.subr.mxu0 0.0
    %1195 = vmatpush1.xpose.msra.mxu0 %v1166
    %1196 = vmatprep.subr.mxu0 0.0
    %1197 = vmatpush1.xpose.msra.mxu0 %v1163
    %1198 = vmatprep.subr.mxu0 0.0
    %1199 = vmatpush1.xpose.msra.mxu0 %v1160
    %1200 = vmatprep.subr.mxu0 0.0
    %1201 = vmatpush1.xpose.msra.mxu0 %v1157
    %1202 = vmatprep.subr.mxu0 0.0
    %1203 = vmatpush1.xpose.msra.mxu0 %v1154
    %1204 = vmatprep.subr.mxu0 0.0
    %1205 = vmatpush1.xpose.msra.mxu0 %v1151
    %1206 = vmatprep.subr.mxu0 0.0
    %1207 = vmatpush2.xpose.msra.mxu0 0.0
    %1208 = vmatprep.subr.mxu0 0.0
    %1209 = vmatpush2.xpose.msra.mxu0 0.0
    %1210 = vmatprep.subr.mxu0 0.0
    %1211 = vmatpush2.xpose.msra.mxu0 0.0
    %1212 = vmatprep.subr.mxu0 0.0
    %1213 = vmatpush2.xpose.msra.mxu0 0.0
    %1214 = vmatprep.subr.mxu0 0.0
    %1215 = vmatpush2.xpose.msra.mxu0 0.0
    %1216 = vmatprep.subr.mxu0 0.0
    %1217 = vmatpush2.xpose.msra.mxu0 0.0
    %1218 = vmatprep.subr.mxu0 0.0
    %1219 = vmatpush2.xpose.msra.mxu0 0.0
    %1220 = vmatprep.subr.mxu0 0.0
    %1221 = vmatpush2.xpose.msra.mxu0 0.0
    %1222 = vmatprep.subr.mxu0 0.0
    %1223 = vmatpush2.xpose.msra.mxu0 0.0
    %1224 = vmatprep.subr.mxu0 0.0
    %1225 = vmatpush2.xpose.msra.mxu0 0.0
    %1226 = vmatprep.subr.mxu0 0.0
    %1227 = vmatpush2.xpose.msra.mxu0 0.0
    %1228 = vmatprep.subr.mxu0 0.0
    %1229 = vmatpush2.xpose.msra.mxu0 0.0
    %1230 = vmatprep.subr.mxu0 0.0
    %1231 = vmatpush2.xpose.msra.mxu0 0.0
    %1232 = vmatprep.subr.mxu0 0.0
    %1233 = vmatpush2.xpose.msra.mxu0 0.0
    %1234 = vmatprep.subr.mxu0 0.0
    %1235 = vmatpush2.xpose.msra.mxu0 0.0
    %1236 = vmatprep.subr.mxu0 0.0
    %1237 = vmatpush2.xpose.msra.mxu0 0.0
    %1238 = vmatprep.mubr.f32.mxu0 0.0
    %1239 = vmatmul.mubr.f32.gmra.mxu0 %v1127
    %v1240 = vpop.f32.mrf.mxu0
    %v1241 = vadd.f32 0.0, %v1240
    %v1242 = vpop.f32.mrf.mxu0
    %1243 = vmatprep.mubr.f32.mxu0 0.0
    %1244 = vmatmul.mubr.f32.gmra.mxu0 %v1130
    %v1245 = vpop.f32.mrf.mxu0
    %v1246 = vadd.f32 0.0, %v1245
    %v1247 = vpop.f32.mrf.mxu0
    %1248 = vmatprep.mubr.f32.mxu0 0.0
    %1249 = vmatmul.mubr.f32.gmra.mxu0 %v1133
    %v1250 = vpop.f32.mrf.mxu0
    %v1251 = vadd.f32 0.0, %v1250
    %v1252 = vpop.f32.mrf.mxu0
    %1253 = vmatprep.mubr.f32.mxu0 0.0
    %1254 = vmatmul.mubr.f32.gmra.mxu0 %v1136
    %v1255 = vpop.f32.mrf.mxu0
    %v1256 = vadd.f32 0.0, %v1255
    %v1257 = vpop.f32.mrf.mxu0
    %1258 = vmatprep.mubr.f32.mxu0 0.0
    %1259 = vmatmul.mubr.f32.gmra.mxu0 %v1139
    %v1260 = vpop.f32.mrf.mxu0
    %v1261 = vadd.f32 0.0, %v1260
    %v1262 = vpop.f32.mrf.mxu0
    %1263 = vmatprep.mubr.f32.mxu0 0.0
    %1264 = vmatmul.mubr.f32.gmra.mxu0 %v1142
    %v1265 = vpop.f32.mrf.mxu0
    %v1266 = vadd.f32 0.0, %v1265
    %v1267 = vpop.f32.mrf.mxu0
    %1268 = vmatprep.mubr.f32.mxu0 0.0
    %1269 = vmatmul.mubr.f32.gmra.mxu0 %v1145
    %v1270 = vpop.f32.mrf.mxu0
    %v1271 = vadd.f32 0.0, %v1270
    %v1272 = vpop.f32.mrf.mxu0
    %1273 = vmatprep.mubr.f32.mxu0 0.0
    %1274 = vmatmul.mubr.f32.gmra.mxu0 %v1148
    %v1275 = vpop.f32.mrf.mxu0
    %v1276 = vadd.f32 0.0, %v1275
    %v1277 = vpop.f32.mrf.mxu0
    %1278 = vdwg.mxu0
    %v1280 = vsel %vm207, %v71, 0
    %v1283 = vsel %vm207, %v72, 0
    %v1286 = vsel %vm207, %v73, 0
    %v1289 = vsel %vm207, %v74, 0
    %v1292 = vsel %vm207, %v75, 0
    %v1295 = vsel %vm207, %v76, 0
    %v1298 = vsel %vm207, %v77, 0
    %v1301 = vsel %vm207, %v78, 0
    %v1304 = vsel %vm207, %v135, 0
    %v1307 = vsel %vm207, %v136, 0
    %v1310 = vsel %vm207, %v137, 0
    %v1313 = vsel %vm207, %v138, 0
    %v1316 = vsel %vm207, %v139, 0
    %v1319 = vsel %vm207, %v140, 0
    %v1322 = vsel %vm207, %v141, 0
    %v1325 = vsel %vm207, %v142, 0
    %1327 = vmatprep.subr.mxu0 0.0
    %1328 = vmatpush1.xpose.msra.mxu0 0.0
    %1329 = vmatprep.subr.mxu0 0.0
    %1330 = vmatpush1.xpose.msra.mxu0 0.0
    %1331 = vmatprep.subr.mxu0 0.0
    %1332 = vmatpush1.xpose.msra.mxu0 0.0
    %1333 = vmatprep.subr.mxu0 0.0
    %1334 = vmatpush1.xpose.msra.mxu0 0.0
    %1335 = vmatprep.subr.mxu0 0.0
    %1336 = vmatpush1.xpose.msra.mxu0 0.0
    %1337 = vmatprep.subr.mxu0 0.0
    %1338 = vmatpush1.xpose.msra.mxu0 0.0
    %1339 = vmatprep.subr.mxu0 0.0
    %1340 = vmatpush1.xpose.msra.mxu0 0.0
    %1341 = vmatprep.subr.mxu0 0.0
    %1342 = vmatpush1.xpose.msra.mxu0 0.0
    %1343 = vmatprep.subr.mxu0 0.0
    %1344 = vmatpush1.xpose.msra.mxu0 %v1325
    %1345 = vmatprep.subr.mxu0 0.0
    %1346 = vmatpush1.xpose.msra.mxu0 %v1322
    %1347 = vmatprep.subr.mxu0 0.0
    %1348 = vmatpush1.xpose.msra.mxu0 %v1319
    %1349 = vmatprep.subr.mxu0 0.0
    %1350 = vmatpush1.xpose.msra.mxu0 %v1316
    %1351 = vmatprep.subr.mxu0 0.0
    %1352 = vmatpush1.xpose.msra.mxu0 %v1313
    %1353 = vmatprep.subr.mxu0 0.0
    %1354 = vmatpush1.xpose.msra.mxu0 %v1310
    %1355 = vmatprep.subr.mxu0 0.0
    %1356 = vmatpush1.xpose.msra.mxu0 %v1307
    %1357 = vmatprep.subr.mxu0 0.0
    %1358 = vmatpush1.xpose.msra.mxu0 %v1304
    %1359 = vmatprep.subr.mxu0 0.0
    %1360 = vmatpush2.xpose.msra.mxu0 0.0
    %1361 = vmatprep.subr.mxu0 0.0
    %1362 = vmatpush2.xpose.msra.mxu0 0.0
    %1363 = vmatprep.subr.mxu0 0.0
    %1364 = vmatpush2.xpose.msra.mxu0 0.0
    %1365 = vmatprep.subr.mxu0 0.0
    %1366 = vmatpush2.xpose.msra.mxu0 0.0
    %1367 = vmatprep.subr.mxu0 0.0
    %1368 = vmatpush2.xpose.msra.mxu0 0.0
    %1369 = vmatprep.subr.mxu0 0.0
    %1370 = vmatpush2.xpose.msra.mxu0 0.0
    %1371 = vmatprep.subr.mxu0 0.0
    %1372 = vmatpush2.xpose.msra.mxu0 0.0
    %1373 = vmatprep.subr.mxu0 0.0
    %1374 = vmatpush2.xpose.msra.mxu0 0.0
    %1375 = vmatprep.subr.mxu0 0.0
    %1376 = vmatpush2.xpose.msra.mxu0 0.0
    %1377 = vmatprep.subr.mxu0 0.0
    %1378 = vmatpush2.xpose.msra.mxu0 0.0
    %1379 = vmatprep.subr.mxu0 0.0
    %1380 = vmatpush2.xpose.msra.mxu0 0.0
    %1381 = vmatprep.subr.mxu0 0.0
    %1382 = vmatpush2.xpose.msra.mxu0 0.0
    %1383 = vmatprep.subr.mxu0 0.0
    %1384 = vmatpush2.xpose.msra.mxu0 0.0
    %1385 = vmatprep.subr.mxu0 0.0
    %1386 = vmatpush2.xpose.msra.mxu0 0.0
    %1387 = vmatprep.subr.mxu0 0.0
    %1388 = vmatpush2.xpose.msra.mxu0 0.0
    %1389 = vmatprep.subr.mxu0 0.0
    %1390 = vmatpush2.xpose.msra.mxu0 0.0
    %1391 = vmatprep.mubr.f32.mxu0 0.0
    %1392 = vmatmul.mubr.f32.gmra.mxu0 %v1280
    %v1393 = vpop.f32.mrf.mxu0
    %v1394 = vadd.f32 0.0, %v1393
    %v1395 = vpop.f32.mrf.mxu0
    %1396 = vmatprep.mubr.f32.mxu0 0.0
    %1397 = vmatmul.mubr.f32.gmra.mxu0 %v1283
    %v1398 = vpop.f32.mrf.mxu0
    %v1399 = vadd.f32 0.0, %v1398
    %v1400 = vpop.f32.mrf.mxu0
    %1401 = vmatprep.mubr.f32.mxu0 0.0
    %1402 = vmatmul.mubr.f32.gmra.mxu0 %v1286
    %v1403 = vpop.f32.mrf.mxu0
    %v1404 = vadd.f32 0.0, %v1403
    %v1405 = vpop.f32.mrf.mxu0
    %1406 = vmatprep.mubr.f32.mxu0 0.0
    %1407 = vmatmul.mubr.f32.gmra.mxu0 %v1289
    %v1408 = vpop.f32.mrf.mxu0
    %v1409 = vadd.f32 0.0, %v1408
    %v1410 = vpop.f32.mrf.mxu0
    %1411 = vmatprep.mubr.f32.mxu0 0.0
    %1412 = vmatmul.mubr.f32.gmra.mxu0 %v1292
    %v1413 = vpop.f32.mrf.mxu0
    %v1414 = vadd.f32 0.0, %v1413
    %v1415 = vpop.f32.mrf.mxu0
    %1416 = vmatprep.mubr.f32.mxu0 0.0
    %1417 = vmatmul.mubr.f32.gmra.mxu0 %v1295
    %v1418 = vpop.f32.mrf.mxu0
    %v1419 = vadd.f32 0.0, %v1418
    %v1420 = vpop.f32.mrf.mxu0
    %1421 = vmatprep.mubr.f32.mxu0 0.0
    %1422 = vmatmul.mubr.f32.gmra.mxu0 %v1298
    %v1423 = vpop.f32.mrf.mxu0
    %v1424 = vadd.f32 0.0, %v1423
    %v1425 = vpop.f32.mrf.mxu0
    %1426 = vmatprep.mubr.f32.mxu0 0.0
    %1427 = vmatmul.mubr.f32.gmra.mxu0 %v1301
    %v1428 = vpop.f32.mrf.mxu0
    %v1429 = vadd.f32 0.0, %v1428
    %v1430 = vpop.f32.mrf.mxu0
    %1431 = vdwg.mxu0
    %vm1432 = vcmask 523264
    %v1433 = vsel %vm1432, %v323, -inf
    %1434 = vmax.xlane.f32.xlu0 %v1433
    %v1435 = vpop.xlane.xlu0 %1434
    %v1436 = vsel %vm1432, %v328, -inf
    %1437 = vmax.xlane.f32.xlu0 %v1436
    %v1438 = vpop.xlane.xlu0 %1437
    %v1439 = vsel %vm1432, %v333, -inf
    %1440 = vmax.xlane.f32.xlu0 %v1439
    %v1441 = vpop.xlane.xlu0 %1440
    %v1442 = vsel %vm1432, %v338, -inf
    %1443 = vmax.xlane.f32.xlu0 %v1442
    %v1444 = vpop.xlane.xlu0 %1443
    %v1445 = vsel %vm1432, %v343, -inf
    %1446 = vmax.xlane.f32.xlu0 %v1445
    %v1447 = vpop.xlane.xlu0 %1446
    %v1448 = vsel %vm1432, %v348, -inf
    %1449 = vmax.xlane.f32.xlu0 %v1448
    %v1450 = vpop.xlane.xlu0 %1449
    %v1451 = vsel %vm1432, %v353, -inf
    %1452 = vmax.xlane.f32.xlu0 %v1451
    %v1453 = vpop.xlane.xlu0 %1452
    %v1454 = vsel %vm1432, %v358, -inf
    %1455 = vmax.xlane.f32.xlu0 %v1454
    %v1456 = vpop.xlane.xlu0 %1455
    %v1457 = vsel %vm1432, %v476, -inf
    %1458 = vmax.xlane.f32.xlu0 %v1457
    %v1459 = vpop.xlane.xlu0 %1458
    %v1460 = vsel %vm1432, %v481, -inf
    %1461 = vmax.xlane.f32.xlu0 %v1460
    %v1462 = vpop.xlane.xlu0 %1461
    %v1463 = vsel %vm1432, %v486, -inf
    %1464 = vmax.xlane.f32.xlu0 %v1463
    %v1465 = vpop.xlane.xlu0 %1464
    %v1466 = vsel %vm1432, %v491, -inf
    %1467 = vmax.xlane.f32.xlu0 %v1466
    %v1468 = vpop.xlane.xlu0 %1467
    %v1469 = vsel %vm1432, %v496, -inf
    %1470 = vmax.xlane.f32.xlu0 %v1469
    %v1471 = vpop.xlane.xlu0 %1470
    %v1472 = vsel %vm1432, %v501, -inf
    %1473 = vmax.xlane.f32.xlu0 %v1472
    %v1474 = vpop.xlane.xlu0 %1473
    %v1475 = vsel %vm1432, %v506, -inf
    %1476 = vmax.xlane.f32.xlu0 %v1475
    %v1477 = vpop.xlane.xlu0 %1476
    %v1478 = vsel %vm1432, %v511, -inf
    %1479 = vmax.xlane.f32.xlu0 %v1478
    %v1480 = vpop.xlane.xlu0 %1479
    %v1481 = vsel %vm1432, %v629, -inf
    %1482 = vmax.xlane.f32.xlu0 %v1481
    %v1483 = vpop.xlane.xlu0 %1482
    %v1484 = vsel %vm1432, %v634, -inf
    %1485 = vmax.xlane.f32.xlu0 %v1484
    %v1486 = vpop.xlane.xlu0 %1485
    %v1487 = vsel %vm1432, %v639, -inf
    %1488 = vmax.xlane.f32.xlu0 %v1487
    %v1489 = vpop.xlane.xlu0 %1488
    %v1490 = vsel %vm1432, %v644, -inf
    %1491 = vmax.xlane.f32.xlu0 %v1490
    %v1492 = vpop.xlane.xlu0 %1491
    %v1493 = vsel %vm1432, %v649, -inf
    %1494 = vmax.xlane.f32.xlu0 %v1493
    %v1495 = vpop.xlane.xlu0 %1494
    %v1496 = vsel %vm1432, %v654, -inf
    %1497 = vmax.xlane.f32.xlu0 %v1496
    %v1498 = vpop.xlane.xlu0 %1497
    %v1499 = vsel %vm1432, %v659, -inf
    %1500 = vmax.xlane.f32.xlu0 %v1499
    %v1501 = vpop.xlane.xlu0 %1500
    %v1502 = vsel %vm1432, %v664, -inf
    %1503 = vmax.xlane.f32.xlu0 %v1502
    %v1504 = vpop.xlane.xlu0 %1503
    %v1505 = vsel %vm1432, %v782, -inf
    %1506 = vmax.xlane.f32.xlu0 %v1505
    %v1507 = vpop.xlane.xlu0 %1506
    %v1508 = vsel %vm1432, %v787, -inf
    %1509 = vmax.xlane.f32.xlu0 %v1508
    %v1510 = vpop.xlane.xlu0 %1509
    %v1511 = vsel %vm1432, %v792, -inf
    %1512 = vmax.xlane.f32.xlu0 %v1511
    %v1513 = vpop.xlane.xlu0 %1512
    %v1514 = vsel %vm1432, %v797, -inf
    %1515 = vmax.xlane.f32.xlu0 %v1514
    %v1516 = vpop.xlane.xlu0 %1515
    %v1517 = vsel %vm1432, %v802, -inf
    %1518 = vmax.xlane.f32.xlu0 %v1517
    %v1519 = vpop.xlane.xlu0 %1518
    %v1520 = vsel %vm1432, %v807, -inf
    %1521 = vmax.xlane.f32.xlu0 %v1520
    %v1522 = vpop.xlane.xlu0 %1521
    %v1523 = vsel %vm1432, %v812, -inf
    %1524 = vmax.xlane.f32.xlu0 %v1523
    %v1525 = vpop.xlane.xlu0 %1524
    %v1526 = vsel %vm1432, %v817, -inf
    %1527 = vmax.xlane.f32.xlu0 %v1526
    %v1528 = vpop.xlane.xlu0 %1527
    %v1529 = vsel %vm1432, %v935, -inf
    %1530 = vmax.xlane.f32.xlu0 %v1529
    %v1531 = vpop.xlane.xlu0 %1530
    %v1532 = vsel %vm1432, %v940, -inf
    %1533 = vmax.xlane.f32.xlu0 %v1532
    %v1534 = vpop.xlane.xlu0 %1533
    %v1535 = vsel %vm1432, %v945, -inf
    %1536 = vmax.xlane.f32.xlu0 %v1535
    %v1537 = vpop.xlane.xlu0 %1536
    %v1538 = vsel %vm1432, %v950, -inf
    %1539 = vmax.xlane.f32.xlu0 %v1538
    %v1540 = vpop.xlane.xlu0 %1539
    %v1541 = vsel %vm1432, %v955, -inf
    %1542 = vmax.xlane.f32.xlu0 %v1541
    %v1543 = vpop.xlane.xlu0 %1542
    %v1544 = vsel %vm1432, %v960, -inf
    %1545 = vmax.xlane.f32.xlu0 %v1544
    %v1546 = vpop.xlane.xlu0 %1545
    %v1547 = vsel %vm1432, %v965, -inf
    %1548 = vmax.xlane.f32.xlu0 %v1547
    %v1549 = vpop.xlane.xlu0 %1548
    %v1550 = vsel %vm1432, %v970, -inf
    %1551 = vmax.xlane.f32.xlu0 %v1550
    %v1552 = vpop.xlane.xlu0 %1551
    %v1553 = vsel %vm1432, %v1088, -inf
    %1554 = vmax.xlane.f32.xlu0 %v1553
    %v1555 = vpop.xlane.xlu0 %1554
    %v1556 = vsel %vm1432, %v1093, -inf
    %1557 = vmax.xlane.f32.xlu0 %v1556
    %v1558 = vpop.xlane.xlu0 %1557
    %v1559 = vsel %vm1432, %v1098, -inf
    %1560 = vmax.xlane.f32.xlu0 %v1559
    %v1561 = vpop.xlane.xlu0 %1560
    %v1562 = vsel %vm1432, %v1103, -inf
    %1563 = vmax.xlane.f32.xlu0 %v1562
    %v1564 = vpop.xlane.xlu0 %1563
    %v1565 = vsel %vm1432, %v1108, -inf
    %1566 = vmax.xlane.f32.xlu0 %v1565
    %v1567 = vpop.xlane.xlu0 %1566
    %v1568 = vsel %vm1432, %v1113, -inf
    %1569 = vmax.xlane.f32.xlu0 %v1568
    %v1570 = vpop.xlane.xlu0 %1569
    %v1571 = vsel %vm1432, %v1118, -inf
    %1572 = vmax.xlane.f32.xlu0 %v1571
    %v1573 = vpop.xlane.xlu0 %1572
    %v1574 = vsel %vm1432, %v1123, -inf
    %1575 = vmax.xlane.f32.xlu0 %v1574
    %v1576 = vpop.xlane.xlu0 %1575
    %v1577 = vsel %vm1432, %v1241, -inf
    %1578 = vmax.xlane.f32.xlu0 %v1577
    %v1579 = vpop.xlane.xlu0 %1578
    %v1580 = vsel %vm1432, %v1246, -inf
    %1581 = vmax.xlane.f32.xlu0 %v1580
    %v1582 = vpop.xlane.xlu0 %1581
    %v1583 = vsel %vm1432, %v1251, -inf
    %1584 = vmax.xlane.f32.xlu0 %v1583
    %v1585 = vpop.xlane.xlu0 %1584
    %v1586 = vsel %vm1432, %v1256, -inf
    %1587 = vmax.xlane.f32.xlu0 %v1586
    %v1588 = vpop.xlane.xlu0 %1587
    %v1589 = vsel %vm1432, %v1261, -inf
    %1590 = vmax.xlane.f32.xlu0 %v1589
    %v1591 = vpop.xlane.xlu0 %1590
    %v1592 = vsel %vm1432, %v1266, -inf
    %1593 = vmax.xlane.f32.xlu0 %v1592
    %v1594 = vpop.xlane.xlu0 %1593
    %v1595 = vsel %vm1432, %v1271, -inf
    %1596 = vmax.xlane.f32.xlu0 %v1595
    %v1597 = vpop.xlane.xlu0 %1596
    %v1598 = vsel %vm1432, %v1276, -inf
    %1599 = vmax.xlane.f32.xlu0 %v1598
    %v1600 = vpop.xlane.xlu0 %1599
    %v1601 = vsel %vm1432, %v1394, -inf
    %1602 = vmax.xlane.f32.xlu0 %v1601
    %v1603 = vpop.xlane.xlu0 %1602
    %v1604 = vsel %vm1432, %v1399, -inf
    %1605 = vmax.xlane.f32.xlu0 %v1604
    %v1606 = vpop.xlane.xlu0 %1605
    %v1607 = vsel %vm1432, %v1404, -inf
    %1608 = vmax.xlane.f32.xlu0 %v1607
    %v1609 = vpop.xlane.xlu0 %1608
    %v1610 = vsel %vm1432, %v1409, -inf
    %1611 = vmax.xlane.f32.xlu0 %v1610
    %v1612 = vpop.xlane.xlu0 %1611
    %v1613 = vsel %vm1432, %v1414, -inf
    %1614 = vmax.xlane.f32.xlu0 %v1613
    %v1615 = vpop.xlane.xlu0 %1614
    %v1616 = vsel %vm1432, %v1419, -inf
    %1617 = vmax.xlane.f32.xlu0 %v1616
    %v1618 = vpop.xlane.xlu0 %1617
    %v1619 = vsel %vm1432, %v1424, -inf
    %1620 = vmax.xlane.f32.xlu0 %v1619
    %v1621 = vpop.xlane.xlu0 %1620
    %v1622 = vsel %vm1432, %v1429, -inf
    %1623 = vmax.xlane.f32.xlu0 %v1622
    %v1624 = vpop.xlane.xlu0 %1623
    %v1625 = vsub.f32 %v323, %v1435
    %v1626 = vsub.f32 %v328, %v1438
    %v1627 = vsub.f32 %v333, %v1441
    %v1628 = vsub.f32 %v338, %v1444
    %v1629 = vsub.f32 %v343, %v1447
    %v1630 = vsub.f32 %v348, %v1450
    %v1631 = vsub.f32 %v353, %v1453
    %v1632 = vsub.f32 %v358, %v1456
    %v1633 = vsub.f32 %v476, %v1459
    %v1634 = vsub.f32 %v481, %v1462
    %v1635 = vsub.f32 %v486, %v1465
    %v1636 = vsub.f32 %v491, %v1468
    %v1637 = vsub.f32 %v496, %v1471
    %v1638 = vsub.f32 %v501, %v1474
    %v1639 = vsub.f32 %v506, %v1477
    %v1640 = vsub.f32 %v511, %v1480
    %v1641 = vsub.f32 %v629, %v1483
    %v1642 = vsub.f32 %v634, %v1486
    %v1643 = vsub.f32 %v639, %v1489
    %v1644 = vsub.f32 %v644, %v1492
    %v1645 = vsub.f32 %v649, %v1495
    %v1646 = vsub.f32 %v654, %v1498
    %v1647 = vsub.f32 %v659, %v1501
    %v1648 = vsub.f32 %v664, %v1504
    %v1649 = vsub.f32 %v782, %v1507
    %v1650 = vsub.f32 %v787, %v1510
    %v1651 = vsub.f32 %v792, %v1513
    %v1652 = vsub.f32 %v797, %v1516
    %v1653 = vsub.f32 %v802, %v1519
    %v1654 = vsub.f32 %v807, %v1522
    %v1655 = vsub.f32 %v812, %v1525
    %v1656 = vsub.f32 %v817, %v1528
    %v1657 = vsub.f32 %v935, %v1531
    %v1658 = vsub.f32 %v940, %v1534
    %v1659 = vsub.f32 %v945, %v1537
    %v1660 = vsub.f32 %v950, %v1540
    %v1661 = vsub.f32 %v955, %v1543
    %v1662 = vsub.f32 %v960, %v1546
    %v1663 = vsub.f32 %v965, %v1549
    %v1664 = vsub.f32 %v970, %v1552
    %v1665 = vsub.f32 %v1088, %v1555
    %v1666 = vsub.f32 %v1093, %v1558
    %v1667 = vsub.f32 %v1098, %v1561
    %v1668 = vsub.f32 %v1103, %v1564
    %v1669 = vsub.f32 %v1108, %v1567
    %v1670 = vsub.f32 %v1113, %v1570
    %v1671 = vsub.f32 %v1118, %v1573
    %v1672 = vsub.f32 %v1123, %v1576
    %v1673 = vsub.f32 %v1241, %v1579
    %v1674 = vsub.f32 %v1246, %v1582
    %v1675 = vsub.f32 %v1251, %v1585
    %v1676 = vsub.f32 %v1256, %v1588
    %v1677 = vsub.f32 %v1261, %v1591
    %v1678 = vsub.f32 %v1266, %v1594
    %v1679 = vsub.f32 %v1271, %v1597
    %v1680 = vsub.f32 %v1276, %v1600
    %v1681 = vsub.f32 %v1394, %v1603
    %v1682 = vsub.f32 %v1399, %v1606
    %v1683 = vsub.f32 %v1404, %v1609
    %v1684 = vsub.f32 %v1409, %v1612
    %v1685 = vsub.f32 %v1414, %v1615
    %v1686 = vsub.f32 %v1419, %v1618
    %v1687 = vsub.f32 %v1424, %v1621
    %v1688 = vsub.f32 %v1429, %v1624
    %v1689 = vmul.f32 %v1625, 1.442695
    %v1690 = vpow.pop %v1689
    %v1691 = vmul.f32 %v1626, 1.442695
    %v1692 = vpow.pop %v1691
    %v1693 = vmul.f32 %v1627, 1.442695
    %v1694 = vpow.pop %v1693
    %v1695 = vmul.f32 %v1628, 1.442695
    %v1696 = vpow.pop %v1695
    %v1697 = vmul.f32 %v1629, 1.442695
    %v1698 = vpow.pop %v1697
    %v1699 = vmul.f32 %v1630, 1.442695
    %v1700 = vpow.pop %v1699
    %v1701 = vmul.f32 %v1631, 1.442695
    %v1702 = vpow.pop %v1701
    %v1703 = vmul.f32 %v1632, 1.442695
    %v1704 = vpow.pop %v1703
    %v1705 = vmul.f32 %v1633, 1.442695
    %v1706 = vpow.pop %v1705
    %v1707 = vmul.f32 %v1634, 1.442695
    %v1708 = vpow.pop %v1707
    %v1709 = vmul.f32 %v1635, 1.442695
    %v1710 = vpow.pop %v1709
    %v1711 = vmul.f32 %v1636, 1.442695
    %v1712 = vpow.pop %v1711
    %v1713 = vmul.f32 %v1637, 1.442695
    %v1714 = vpow.pop %v1713
    %v1715 = vmul.f32 %v1638, 1.442695
    %v1716 = vpow.pop %v1715
    %v1717 = vmul.f32 %v1639, 1.442695
    %v1718 = vpow.pop %v1717
    %v1719 = vmul.f32 %v1640, 1.442695
    %v1720 = vpow.pop %v1719
    %v1721 = vmul.f32 %v1641, 1.442695
    %v1722 = vpow.pop %v1721
    %v1723 = vmul.f32 %v1642, 1.442695
    %v1724 = vpow.pop %v1723
    %v1725 = vmul.f32 %v1643, 1.442695
    %v1726 = vpow.pop %v1725
    %v1727 = vmul.f32 %v1644, 1.442695
    %v1728 = vpow.pop %v1727
    %v1729 = vmul.f32 %v1645, 1.442695
    %v1730 = vpow.pop %v1729
    %v1731 = vmul.f32 %v1646, 1.442695
    %v1732 = vpow.pop %v1731
    %v1733 = vmul.f32 %v1647, 1.442695
    %v1734 = vpow.pop %v1733
    %v1735 = vmul.f32 %v1648, 1.442695
    %v1736 = vpow.pop %v1735
    %v1737 = vmul.f32 %v1649, 1.442695
    %v1738 = vpow.pop %v1737
    %v1739 = vmul.f32 %v1650, 1.442695
    %v1740 = vpow.pop %v1739
    %v1741 = vmul.f32 %v1651, 1.442695
    %v1742 = vpow.pop %v1741
    %v1743 = vmul.f32 %v1652, 1.442695
    %v1744 = vpow.pop %v1743
    %v1745 = vmul.f32 %v1653, 1.442695
    %v1746 = vpow.pop %v1745
    %v1747 = vmul.f32 %v1654, 1.442695
    %v1748 = vpow.pop %v1747
    %v1749 = vmul.f32 %v1655, 1.442695
    %v1750 = vpow.pop %v1749
    %v1751 = vmul.f32 %v1656, 1.442695
    %v1752 = vpow.pop %v1751
    %v1753 = vmul.f32 %v1657, 1.442695
    %v1754 = vpow.pop %v1753
    %v1755 = vmul.f32 %v1658, 1.442695
    %v1756 = vpow.pop %v1755
    %v1757 = vmul.f32 %v1659, 1.442695
    %v1758 = vpow.pop %v1757
    %v1759 = vmul.f32 %v1660, 1.442695
    %v1760 = vpow.pop %v1759
    %v1761 = vmul.f32 %v1661, 1.442695
    %v1762 = vpow.pop %v1761
    %v1763 = vmul.f32 %v1662, 1.442695
    %v1764 = vpow.pop %v1763
    %v1765 = vmul.f32 %v1663, 1.442695
    %v1766 = vpow.pop %v1765
    %v1767 = vmul.f32 %v1664, 1.442695
    %v1768 = vpow.pop %v1767
    %v1769 = vmul.f32 %v1665, 1.442695
    %v1770 = vpow.pop %v1769
    %v1771 = vmul.f32 %v1666, 1.442695
    %v1772 = vpow.pop %v1771
    %v1773 = vmul.f32 %v1667, 1.442695
    %v1774 = vpow.pop %v1773
    %v1775 = vmul.f32 %v1668, 1.442695
    %v1776 = vpow.pop %v1775
    %v1777 = vmul.f32 %v1669, 1.442695
    %v1778 = vpow.pop %v1777
    %v1779 = vmul.f32 %v1670, 1.442695
    %v1780 = vpow.pop %v1779
    %v1781 = vmul.f32 %v1671, 1.442695
    %v1782 = vpow.pop %v1781
    %v1783 = vmul.f32 %v1672, 1.442695
    %v1784 = vpow.pop %v1783
    %v1785 = vmul.f32 %v1673, 1.442695
    %v1786 = vpow.pop %v1785
    %v1787 = vmul.f32 %v1674, 1.442695
    %v1788 = vpow.pop %v1787
    %v1789 = vmul.f32 %v1675, 1.442695
    %v1790 = vpow.pop %v1789
    %v1791 = vmul.f32 %v1676, 1.442695
    %v1792 = vpow.pop %v1791
    %v1793 = vmul.f32 %v1677, 1.442695
    %v1794 = vpow.pop %v1793
    %v1795 = vmul.f32 %v1678, 1.442695
    %v1796 = vpow.pop %v1795
    %v1797 = vmul.f32 %v1679, 1.442695
    %v1798 = vpow.pop %v1797
    %v1799 = vmul.f32 %v1680, 1.442695
    %v1800 = vpow.pop %v1799
    %v1801 = vmul.f32 %v1681, 1.442695
    %v1802 = vpow.pop %v1801
    %v1803 = vmul.f32 %v1682, 1.442695
    %v1804 = vpow.pop %v1803
    %v1805 = vmul.f32 %v1683, 1.442695
    %v1806 = vpow.pop %v1805
    %v1807 = vmul.f32 %v1684, 1.442695
    %v1808 = vpow.pop %v1807
    %v1809 = vmul.f32 %v1685, 1.442695
    %v1810 = vpow.pop %v1809
    %v1811 = vmul.f32 %v1686, 1.442695
    %v1812 = vpow.pop %v1811
    %v1813 = vmul.f32 %v1687, 1.442695
    %v1814 = vpow.pop %v1813
    %v1815 = vmul.f32 %v1688, 1.442695
    %v1816 = vpow.pop %v1815
    %v1817 = vsel %vm1432, %v1690, 0.0
    %1818 = vadd.xlane.f32.xlu0 %v1817
    %v1819 = vpop.xlane.xlu0 %1818
    %v1820 = vsel %vm1432, %v1692, 0.0
    %1821 = vadd.xlane.f32.xlu0 %v1820
    %v1822 = vpop.xlane.xlu0 %1821
    %v1823 = vsel %vm1432, %v1694, 0.0
    %1824 = vadd.xlane.f32.xlu0 %v1823
    %v1825 = vpop.xlane.xlu0 %1824
    %v1826 = vsel %vm1432, %v1696, 0.0
    %1827 = vadd.xlane.f32.xlu0 %v1826
    %v1828 = vpop.xlane.xlu0 %1827
    %v1829 = vsel %vm1432, %v1698, 0.0
    %1830 = vadd.xlane.f32.xlu0 %v1829
    %v1831 = vpop.xlane.xlu0 %1830
    %v1832 = vsel %vm1432, %v1700, 0.0
    %1833 = vadd.xlane.f32.xlu0 %v1832
    %v1834 = vpop.xlane.xlu0 %1833
    %v1835 = vsel %vm1432, %v1702, 0.0
    %1836 = vadd.xlane.f32.xlu0 %v1835
    %v1837 = vpop.xlane.xlu0 %1836
    %v1838 = vsel %vm1432, %v1704, 0.0
    %1839 = vadd.xlane.f32.xlu0 %v1838
    %v1840 = vpop.xlane.xlu0 %1839
    %v1841 = vsel %vm1432, %v1706, 0.0
    %1842 = vadd.xlane.f32.xlu0 %v1841
    %v1843 = vpop.xlane.xlu0 %1842
    %v1844 = vsel %vm1432, %v1708, 0.0
    %1845 = vadd.xlane.f32.xlu0 %v1844
    %v1846 = vpop.xlane.xlu0 %1845
    %v1847 = vsel %vm1432, %v1710, 0.0
    %1848 = vadd.xlane.f32.xlu0 %v1847
    %v1849 = vpop.xlane.xlu0 %1848
    %v1850 = vsel %vm1432, %v1712, 0.0
    %1851 = vadd.xlane.f32.xlu0 %v1850
    %v1852 = vpop.xlane.xlu0 %1851
    %v1853 = vsel %vm1432, %v1714, 0.0
    %1854 = vadd.xlane.f32.xlu0 %v1853
    %v1855 = vpop.xlane.xlu0 %1854
    %v1856 = vsel %vm1432, %v1716, 0.0
    %1857 = vadd.xlane.f32.xlu0 %v1856
    %v1858 = vpop.xlane.xlu0 %1857
    %v1859 = vsel %vm1432, %v1718, 0.0
    %1860 = vadd.xlane.f32.xlu0 %v1859
    %v1861 = vpop.xlane.xlu0 %1860
    %v1862 = vsel %vm1432, %v1720, 0.0
    %1863 = vadd.xlane.f32.xlu0 %v1862
    %v1864 = vpop.xlane.xlu0 %1863
    %v1865 = vsel %vm1432, %v1722, 0.0
    %1866 = vadd.xlane.f32.xlu0 %v1865
    %v1867 = vpop.xlane.xlu0 %1866
    %v1868 = vsel %vm1432, %v1724, 0.0
    %1869 = vadd.xlane.f32.xlu0 %v1868
    %v1870 = vpop.xlane.xlu0 %1869
    %v1871 = vsel %vm1432, %v1726, 0.0
    %1872 = vadd.xlane.f32.xlu0 %v1871
    %v1873 = vpop.xlane.xlu0 %1872
    %v1874 = vsel %vm1432, %v1728, 0.0
    %1875 = vadd.xlane.f32.xlu0 %v1874
    %v1876 = vpop.xlane.xlu0 %1875
    %v1877 = vsel %vm1432, %v1730, 0.0
    %1878 = vadd.xlane.f32.xlu0 %v1877
    %v1879 = vpop.xlane.xlu0 %1878
    %v1880 = vsel %vm1432, %v1732, 0.0
    %1881 = vadd.xlane.f32.xlu0 %v1880
    %v1882 = vpop.xlane.xlu0 %1881
    %v1883 = vsel %vm1432, %v1734, 0.0
    %1884 = vadd.xlane.f32.xlu0 %v1883
    %v1885 = vpop.xlane.xlu0 %1884
    %v1886 = vsel %vm1432, %v1736, 0.0
    %1887 = vadd.xlane.f32.xlu0 %v1886
    %v1888 = vpop.xlane.xlu0 %1887
    %v1889 = vsel %vm1432, %v1738, 0.0
    %1890 = vadd.xlane.f32.xlu0 %v1889
    %v1891 = vpop.xlane.xlu0 %1890
    %v1892 = vsel %vm1432, %v1740, 0.0
    %1893 = vadd.xlane.f32.xlu0 %v1892
    %v1894 = vpop.xlane.xlu0 %1893
    %v1895 = vsel %vm1432, %v1742, 0.0
    %1896 = vadd.xlane.f32.xlu0 %v1895
    %v1897 = vpop.xlane.xlu0 %1896
    %v1898 = vsel %vm1432, %v1744, 0.0
    %1899 = vadd.xlane.f32.xlu0 %v1898
    %v1900 = vpop.xlane.xlu0 %1899
    %v1901 = vsel %vm1432, %v1746, 0.0
    %1902 = vadd.xlane.f32.xlu0 %v1901
    %v1903 = vpop.xlane.xlu0 %1902
    %v1904 = vsel %vm1432, %v1748, 0.0
    %1905 = vadd.xlane.f32.xlu0 %v1904
    %v1906 = vpop.xlane.xlu0 %1905
    %v1907 = vsel %vm1432, %v1750, 0.0
    %1908 = vadd.xlane.f32.xlu0 %v1907
    %v1909 = vpop.xlane.xlu0 %1908
    %v1910 = vsel %vm1432, %v1752, 0.0
    %1911 = vadd.xlane.f32.xlu0 %v1910
    %v1912 = vpop.xlane.xlu0 %1911
    %v1913 = vsel %vm1432, %v1754, 0.0
    %1914 = vadd.xlane.f32.xlu0 %v1913
    %v1915 = vpop.xlane.xlu0 %1914
    %v1916 = vsel %vm1432, %v1756, 0.0
    %1917 = vadd.xlane.f32.xlu0 %v1916
    %v1918 = vpop.xlane.xlu0 %1917
    %v1919 = vsel %vm1432, %v1758, 0.0
    %1920 = vadd.xlane.f32.xlu0 %v1919
    %v1921 = vpop.xlane.xlu0 %1920
    %v1922 = vsel %vm1432, %v1760, 0.0
    %1923 = vadd.xlane.f32.xlu0 %v1922
    %v1924 = vpop.xlane.xlu0 %1923
    %v1925 = vsel %vm1432, %v1762, 0.0
    %1926 = vadd.xlane.f32.xlu0 %v1925
    %v1927 = vpop.xlane.xlu0 %1926
    %v1928 = vsel %vm1432, %v1764, 0.0
    %1929 = vadd.xlane.f32.xlu0 %v1928
    %v1930 = vpop.xlane.xlu0 %1929
    %v1931 = vsel %vm1432, %v1766, 0.0
    %1932 = vadd.xlane.f32.xlu0 %v1931
    %v1933 = vpop.xlane.xlu0 %1932
    %v1934 = vsel %vm1432, %v1768, 0.0
    %1935 = vadd.xlane.f32.xlu0 %v1934
    %v1936 = vpop.xlane.xlu0 %1935
    %v1937 = vsel %vm1432, %v1770, 0.0
    %1938 = vadd.xlane.f32.xlu0 %v1937
    %v1939 = vpop.xlane.xlu0 %1938
    %v1940 = vsel %vm1432, %v1772, 0.0
    %1941 = vadd.xlane.f32.xlu0 %v1940
    %v1942 = vpop.xlane.xlu0 %1941
    %v1943 = vsel %vm1432, %v1774, 0.0
    %1944 = vadd.xlane.f32.xlu0 %v1943
    %v1945 = vpop.xlane.xlu0 %1944
    %v1946 = vsel %vm1432, %v1776, 0.0
    %1947 = vadd.xlane.f32.xlu0 %v1946
    %v1948 = vpop.xlane.xlu0 %1947
    %v1949 = vsel %vm1432, %v1778, 0.0
    %1950 = vadd.xlane.f32.xlu0 %v1949
    %v1951 = vpop.xlane.xlu0 %1950
    %v1952 = vsel %vm1432, %v1780, 0.0
    %1953 = vadd.xlane.f32.xlu0 %v1952
    %v1954 = vpop.xlane.xlu0 %1953
    %v1955 = vsel %vm1432, %v1782, 0.0
    %1956 = vadd.xlane.f32.xlu0 %v1955
    %v1957 = vpop.xlane.xlu0 %1956
    %v1958 = vsel %vm1432, %v1784, 0.0
    %1959 = vadd.xlane.f32.xlu0 %v1958
    %v1960 = vpop.xlane.xlu0 %1959
    %v1961 = vsel %vm1432, %v1786, 0.0
    %1962 = vadd.xlane.f32.xlu0 %v1961
    %v1963 = vpop.xlane.xlu0 %1962
    %v1964 = vsel %vm1432, %v1788, 0.0
    %1965 = vadd.xlane.f32.xlu0 %v1964
    %v1966 = vpop.xlane.xlu0 %1965
    %v1967 = vsel %vm1432, %v1790, 0.0
    %1968 = vadd.xlane.f32.xlu0 %v1967
    %v1969 = vpop.xlane.xlu0 %1968
    %v1970 = vsel %vm1432, %v1792, 0.0
    %1971 = vadd.xlane.f32.xlu0 %v1970
    %v1972 = vpop.xlane.xlu0 %1971
    %v1973 = vsel %vm1432, %v1794, 0.0
    %1974 = vadd.xlane.f32.xlu0 %v1973
    %v1975 = vpop.xlane.xlu0 %1974
    %v1976 = vsel %vm1432, %v1796, 0.0
    %1977 = vadd.xlane.f32.xlu0 %v1976
    %v1978 = vpop.xlane.xlu0 %1977
    %v1979 = vsel %vm1432, %v1798, 0.0
    %1980 = vadd.xlane.f32.xlu0 %v1979
    %v1981 = vpop.xlane.xlu0 %1980
    %v1982 = vsel %vm1432, %v1800, 0.0
    %1983 = vadd.xlane.f32.xlu0 %v1982
    %v1984 = vpop.xlane.xlu0 %1983
    %v1985 = vsel %vm1432, %v1802, 0.0
    %1986 = vadd.xlane.f32.xlu0 %v1985
    %v1987 = vpop.xlane.xlu0 %1986
    %v1988 = vsel %vm1432, %v1804, 0.0
    %1989 = vadd.xlane.f32.xlu0 %v1988
    %v1990 = vpop.xlane.xlu0 %1989
    %v1991 = vsel %vm1432, %v1806, 0.0
    %1992 = vadd.xlane.f32.xlu0 %v1991
    %v1993 = vpop.xlane.xlu0 %1992
    %v1994 = vsel %vm1432, %v1808, 0.0
    %1995 = vadd.xlane.f32.xlu0 %v1994
    %v1996 = vpop.xlane.xlu0 %1995
    %v1997 = vsel %vm1432, %v1810, 0.0
    %1998 = vadd.xlane.f32.xlu0 %v1997
    %v1999 = vpop.xlane.xlu0 %1998
    %v2000 = vsel %vm1432, %v1812, 0.0
    %2001 = vadd.xlane.f32.xlu0 %v2000
    %v2002 = vpop.xlane.xlu0 %2001
    %v2003 = vsel %vm1432, %v1814, 0.0
    %2004 = vadd.xlane.f32.xlu0 %v2003
    %v2005 = vpop.xlane.xlu0 %2004
    %v2006 = vsel %vm1432, %v1816, 0.0
    %2007 = vadd.xlane.f32.xlu0 %v2006
    %v2008 = vpop.xlane.xlu0 %2007
    %v2009 = vrcp.pop %v1819
    %v2010 = vrcp.pop %v1822
    %v2011 = vrcp.pop %v1825
    %v2012 = vrcp.pop %v1828
    %v2013 = vrcp.pop %v1831
    %v2014 = vrcp.pop %v1834
    %v2015 = vrcp.pop %v1837
    %v2016 = vrcp.pop %v1840
    %v2017 = vrcp.pop %v1843
    %v2018 = vrcp.pop %v1846
    %v2019 = vrcp.pop %v1849
    %v2020 = vrcp.pop %v1852
    %v2021 = vrcp.pop %v1855
    %v2022 = vrcp.pop %v1858
    %v2023 = vrcp.pop %v1861
    %v2024 = vrcp.pop %v1864
    %v2025 = vrcp.pop %v1867
    %v2026 = vrcp.pop %v1870
    %v2027 = vrcp.pop %v1873
    %v2028 = vrcp.pop %v1876
    %v2029 = vrcp.pop %v1879
    %v2030 = vrcp.pop %v1882
    %v2031 = vrcp.pop %v1885
    %v2032 = vrcp.pop %v1888
    %v2033 = vrcp.pop %v1891
    %v2034 = vrcp.pop %v1894
    %v2035 = vrcp.pop %v1897
    %v2036 = vrcp.pop %v1900
    %v2037 = vrcp.pop %v1903
    %v2038 = vrcp.pop %v1906
    %v2039 = vrcp.pop %v1909
    %v2040 = vrcp.pop %v1912
    %v2041 = vrcp.pop %v1915
    %v2042 = vrcp.pop %v1918
    %v2043 = vrcp.pop %v1921
    %v2044 = vrcp.pop %v1924
    %v2045 = vrcp.pop %v1927
    %v2046 = vrcp.pop %v1930
    %v2047 = vrcp.pop %v1933
    %v2048 = vrcp.pop %v1936
    %v2049 = vrcp.pop %v1939
    %v2050 = vrcp.pop %v1942
    %v2051 = vrcp.pop %v1945
    %v2052 = vrcp.pop %v1948
    %v2053 = vrcp.pop %v1951
    %v2054 = vrcp.pop %v1954
    %v2055 = vrcp.pop %v1957
    %v2056 = vrcp.pop %v1960
    %v2057 = vrcp.pop %v1963
    %v2058 = vrcp.pop %v1966
    %v2059 = vrcp.pop %v1969
    %v2060 = vrcp.pop %v1972
    %v2061 = vrcp.pop %v1975
    %v2062 = vrcp.pop %v1978
    %v2063 = vrcp.pop %v1981
    %v2064 = vrcp.pop %v1984
    %v2065 = vrcp.pop %v1987
    %v2066 = vrcp.pop %v1990
    %v2067 = vrcp.pop %v1993
    %v2068 = vrcp.pop %v1996
    %v2069 = vrcp.pop %v1999
    %v2070 = vrcp.pop %v2002
    %v2071 = vrcp.pop %v2005
    %v2072 = vrcp.pop %v2008
    %v2073 = vmul.f32 %v1690, %v2009
    %v2074 = vmul.f32 %v1692, %v2010
    %v2075 = vmul.f32 %v1694, %v2011
    %v2076 = vmul.f32 %v1696, %v2012
    %v2077 = vmul.f32 %v1698, %v2013
    %v2078 = vmul.f32 %v1700, %v2014
    %v2079 = vmul.f32 %v1702, %v2015
    %v2080 = vmul.f32 %v1704, %v2016
    %v2081 = vmul.f32 %v1706, %v2017
    %v2082 = vmul.f32 %v1708, %v2018
    %v2083 = vmul.f32 %v1710, %v2019
    %v2084 = vmul.f32 %v1712, %v2020
    %v2085 = vmul.f32 %v1714, %v2021
    %v2086 = vmul.f32 %v1716, %v2022
    %v2087 = vmul.f32 %v1718, %v2023
    %v2088 = vmul.f32 %v1720, %v2024
    %v2089 = vmul.f32 %v1722, %v2025
    %v2090 = vmul.f32 %v1724, %v2026
    %v2091 = vmul.f32 %v1726, %v2027
    %v2092 = vmul.f32 %v1728, %v2028
    %v2093 = vmul.f32 %v1730, %v2029
    %v2094 = vmul.f32 %v1732, %v2030
    %v2095 = vmul.f32 %v1734, %v2031
    %v2096 = vmul.f32 %v1736, %v2032
    %v2097 = vmul.f32 %v1738, %v2033
    %v2098 = vmul.f32 %v1740, %v2034
    %v2099 = vmul.f32 %v1742, %v2035
    %v2100 = vmul.f32 %v1744, %v2036
    %v2101 = vmul.f32 %v1746, %v2037
    %v2102 = vmul.f32 %v1748, %v2038
    %v2103 = vmul.f32 %v1750, %v2039
    %v2104 = vmul.f32 %v1752, %v2040
    %v2105 = vmul.f32 %v1754, %v2041
    %v2106 = vmul.f32 %v1756, %v2042
    %v2107 = vmul.f32 %v1758, %v2043
    %v2108 = vmul.f32 %v1760, %v2044
    %v2109 = vmul.f32 %v1762, %v2045
    %v2110 = vmul.f32 %v1764, %v2046
    %v2111 = vmul.f32 %v1766, %v2047
    %v2112 = vmul.f32 %v1768, %v2048
    %v2113 = vmul.f32 %v1770, %v2049
    %v2114 = vmul.f32 %v1772, %v2050
    %v2115 = vmul.f32 %v1774, %v2051
    %v2116 = vmul.f32 %v1776, %v2052
    %v2117 = vmul.f32 %v1778, %v2053
    %v2118 = vmul.f32 %v1780, %v2054
    %v2119 = vmul.f32 %v1782, %v2055
    %v2120 = vmul.f32 %v1784, %v2056
    %v2121 = vmul.f32 %v1786, %v2057
    %v2122 = vmul.f32 %v1788, %v2058
    %v2123 = vmul.f32 %v1790, %v2059
    %v2124 = vmul.f32 %v1792, %v2060
    %v2125 = vmul.f32 %v1794, %v2061
    %v2126 = vmul.f32 %v1796, %v2062
    %v2127 = vmul.f32 %v1798, %v2063
    %v2128 = vmul.f32 %v1800, %v2064
    %v2129 = vmul.f32 %v1802, %v2065
    %v2130 = vmul.f32 %v1804, %v2066
    %v2131 = vmul.f32 %v1806, %v2067
    %v2132 = vmul.f32 %v1808, %v2068
    %v2133 = vmul.f32 %v1810, %v2069
    %v2134 = vmul.f32 %v1812, %v2070
    %v2135 = vmul.f32 %v1814, %v2071
    %v2136 = vmul.f32 %v1816, %v2072
    %v2138 = vsel %vm1432, %v2073, 0
    %v2141 = vsel %vm1432, %v2074, 0
    %v2144 = vsel %vm1432, %v2075, 0
    %v2147 = vsel %vm1432, %v2076, 0
    %v2150 = vsel %vm1432, %v2077, 0
    %v2153 = vsel %vm1432, %v2078, 0
    %v2156 = vsel %vm1432, %v2079, 0
    %v2159 = vsel %vm1432, %v2080, 0
    %2161 = vmatprep.subr.mxu0 0.0
    %2162 = vmatpush1.msra.mxu0 0.0
    %2163 = vmatprep.subr.mxu0 0.0
    %2164 = vmatpush1.msra.mxu0 0.0
    %2165 = vmatprep.subr.mxu0 0.0
    %2166 = vmatpush1.msra.mxu0 0.0
    %2167 = vmatprep.subr.mxu0 0.0
    %2168 = vmatpush1.msra.mxu0 0.0
    %2169 = vmatprep.subr.mxu0 0.0
    %2170 = vmatpush1.msra.mxu0 0.0
    %2171 = vmatprep.subr.mxu0 0.0
    %2172 = vmatpush1.msra.mxu0 0.0
    %2173 = vmatprep.subr.mxu0 0.0
    %2174 = vmatpush1.msra.mxu0 0.0
    %2175 = vmatprep.subr.mxu0 0.0
    %2176 = vmatpush1.msra.mxu0 0.0
    %2177 = vmatprep.subr.mxu0 0.0
    %2178 = vmatpush1.msra.mxu0 %v150
    %2179 = vmatprep.subr.mxu0 0.0
    %2180 = vmatpush1.msra.mxu0 %v149
    %2181 = vmatprep.subr.mxu0 0.0
    %2182 = vmatpush1.msra.mxu0 %v148
    %2183 = vmatprep.subr.mxu0 0.0
    %2184 = vmatpush1.msra.mxu0 %v147
    %2185 = vmatprep.subr.mxu0 0.0
    %2186 = vmatpush1.msra.mxu0 %v146
    %2187 = vmatprep.subr.mxu0 0.0
    %2188 = vmatpush1.msra.mxu0 %v145
    %2189 = vmatprep.subr.mxu0 0.0
    %2190 = vmatpush1.msra.mxu0 %v144
    %2191 = vmatprep.subr.mxu0 0.0
    %2192 = vmatpush1.msra.mxu0 %v143
    %2193 = vmatprep.subr.mxu0 0.0
    %2194 = vmatpush2.msra.mxu0 0.0
    %2195 = vmatprep.subr.mxu0 0.0
    %2196 = vmatpush2.msra.mxu0 0.0
    %2197 = vmatprep.subr.mxu0 0.0
    %2198 = vmatpush2.msra.mxu0 0.0
    %2199 = vmatprep.subr.mxu0 0.0
    %2200 = vmatpush2.msra.mxu0 0.0
    %2201 = vmatprep.subr.mxu0 0.0
    %2202 = vmatpush2.msra.mxu0 0.0
    %2203 = vmatprep.subr.mxu0 0.0
    %2204 = vmatpush2.msra.mxu0 0.0
    %2205 = vmatprep.subr.mxu0 0.0
    %2206 = vmatpush2.msra.mxu0 0.0
    %2207 = vmatprep.subr.mxu0 0.0
    %2208 = vmatpush2.msra.mxu0 0.0
    %2209 = vmatprep.subr.mxu0 0.0
    %2210 = vmatpush2.msra.mxu0 0.0
    %2211 = vmatprep.subr.mxu0 0.0
    %2212 = vmatpush2.msra.mxu0 0.0
    %2213 = vmatprep.subr.mxu0 0.0
    %2214 = vmatpush2.msra.mxu0 0.0
    %2215 = vmatprep.subr.mxu0 0.0
    %2216 = vmatpush2.msra.mxu0 0.0
    %2217 = vmatprep.subr.mxu0 0.0
    %2218 = vmatpush2.msra.mxu0 0.0
    %2219 = vmatprep.subr.mxu0 0.0
    %2220 = vmatpush2.msra.mxu0 0.0
    %2221 = vmatprep.subr.mxu0 0.0
    %2222 = vmatpush2.msra.mxu0 0.0
    %2223 = vmatprep.subr.mxu0 0.0
    %2224 = vmatpush2.msra.mxu0 0.0
    %2225 = vmatprep.mubr.f32.mxu0 0.0
    %2226 = vmatmul.mubr.f32.gmra.mxu0 %v2138
    %v2227 = vpop.f32.mrf.mxu0
    %v2228 = vadd.f32 0.0, %v2227
    %v2229 = vpop.f32.mrf.mxu0
    %2230 = vmatprep.mubr.f32.mxu0 0.0
    %2231 = vmatmul.mubr.f32.gmra.mxu0 %v2141
    %v2232 = vpop.f32.mrf.mxu0
    %v2233 = vadd.f32 0.0, %v2232
    %v2234 = vpop.f32.mrf.mxu0
    %2235 = vmatprep.mubr.f32.mxu0 0.0
    %2236 = vmatmul.mubr.f32.gmra.mxu0 %v2144
    %v2237 = vpop.f32.mrf.mxu0
    %v2238 = vadd.f32 0.0, %v2237
    %v2239 = vpop.f32.mrf.mxu0
    %2240 = vmatprep.mubr.f32.mxu0 0.0
    %2241 = vmatmul.mubr.f32.gmra.mxu0 %v2147
    %v2242 = vpop.f32.mrf.mxu0
    %v2243 = vadd.f32 0.0, %v2242
    %v2244 = vpop.f32.mrf.mxu0
    %2245 = vmatprep.mubr.f32.mxu0 0.0
    %2246 = vmatmul.mubr.f32.gmra.mxu0 %v2150
    %v2247 = vpop.f32.mrf.mxu0
    %v2248 = vadd.f32 0.0, %v2247
    %v2249 = vpop.f32.mrf.mxu0
    %2250 = vmatprep.mubr.f32.mxu0 0.0
    %2251 = vmatmul.mubr.f32.gmra.mxu0 %v2153
    %v2252 = vpop.f32.mrf.mxu0
    %v2253 = vadd.f32 0.0, %v2252
    %v2254 = vpop.f32.mrf.mxu0
    %2255 = vmatprep.mubr.f32.mxu0 0.0
    %2256 = vmatmul.mubr.f32.gmra.mxu0 %v2156
    %v2257 = vpop.f32.mrf.mxu0
    %v2258 = vadd.f32 0.0, %v2257
    %v2259 = vpop.f32.mrf.mxu0
    %2260 = vmatprep.mubr.f32.mxu0 0.0
    %2261 = vmatmul.mubr.f32.gmra.mxu0 %v2159
    %v2262 = vpop.f32.mrf.mxu0
    %v2263 = vadd.f32 0.0, %v2262
    %v2264 = vpop.f32.mrf.mxu0
    %2265 = vdwg.mxu0
    %v2267 = vsel %vm1432, %v2081, 0
    %v2270 = vsel %vm1432, %v2082, 0
    %v2273 = vsel %vm1432, %v2083, 0
    %v2276 = vsel %vm1432, %v2084, 0
    %v2279 = vsel %vm1432, %v2085, 0
    %v2282 = vsel %vm1432, %v2086, 0
    %v2285 = vsel %vm1432, %v2087, 0
    %v2288 = vsel %vm1432, %v2088, 0
    %2290 = vmatprep.subr.mxu0 0.0
    %2291 = vmatpush1.msra.mxu0 0.0
    %2292 = vmatprep.subr.mxu0 0.0
    %2293 = vmatpush1.msra.mxu0 0.0
    %2294 = vmatprep.subr.mxu0 0.0
    %2295 = vmatpush1.msra.mxu0 0.0
    %2296 = vmatprep.subr.mxu0 0.0
    %2297 = vmatpush1.msra.mxu0 0.0
    %2298 = vmatprep.subr.mxu0 0.0
    %2299 = vmatpush1.msra.mxu0 0.0
    %2300 = vmatprep.subr.mxu0 0.0
    %2301 = vmatpush1.msra.mxu0 0.0
    %2302 = vmatprep.subr.mxu0 0.0
    %2303 = vmatpush1.msra.mxu0 0.0
    %2304 = vmatprep.subr.mxu0 0.0
    %2305 = vmatpush1.msra.mxu0 0.0
    %2306 = vmatprep.subr.mxu0 0.0
    %2307 = vmatpush1.msra.mxu0 %v158
    %2308 = vmatprep.subr.mxu0 0.0
    %2309 = vmatpush1.msra.mxu0 %v157
    %2310 = vmatprep.subr.mxu0 0.0
    %2311 = vmatpush1.msra.mxu0 %v156
    %2312 = vmatprep.subr.mxu0 0.0
    %2313 = vmatpush1.msra.mxu0 %v155
    %2314 = vmatprep.subr.mxu0 0.0
    %2315 = vmatpush1.msra.mxu0 %v154
    %2316 = vmatprep.subr.mxu0 0.0
    %2317 = vmatpush1.msra.mxu0 %v153
    %2318 = vmatprep.subr.mxu0 0.0
    %2319 = vmatpush1.msra.mxu0 %v152
    %2320 = vmatprep.subr.mxu0 0.0
    %2321 = vmatpush1.msra.mxu0 %v151
    %2322 = vmatprep.subr.mxu0 0.0
    %2323 = vmatpush2.msra.mxu0 0.0
    %2324 = vmatprep.subr.mxu0 0.0
    %2325 = vmatpush2.msra.mxu0 0.0
    %2326 = vmatprep.subr.mxu0 0.0
    %2327 = vmatpush2.msra.mxu0 0.0
    %2328 = vmatprep.subr.mxu0 0.0
    %2329 = vmatpush2.msra.mxu0 0.0
    %2330 = vmatprep.subr.mxu0 0.0
    %2331 = vmatpush2.msra.mxu0 0.0
    %2332 = vmatprep.subr.mxu0 0.0
    %2333 = vmatpush2.msra.mxu0 0.0
    %2334 = vmatprep.subr.mxu0 0.0
    %2335 = vmatpush2.msra.mxu0 0.0
    %2336 = vmatprep.subr.mxu0 0.0
    %2337 = vmatpush2.msra.mxu0 0.0
    %2338 = vmatprep.subr.mxu0 0.0
    %2339 = vmatpush2.msra.mxu0 0.0
    %2340 = vmatprep.subr.mxu0 0.0
    %2341 = vmatpush2.msra.mxu0 0.0
    %2342 = vmatprep.subr.mxu0 0.0
    %2343 = vmatpush2.msra.mxu0 0.0
    %2344 = vmatprep.subr.mxu0 0.0
    %2345 = vmatpush2.msra.mxu0 0.0
    %2346 = vmatprep.subr.mxu0 0.0
    %2347 = vmatpush2.msra.mxu0 0.0
    %2348 = vmatprep.subr.mxu0 0.0
    %2349 = vmatpush2.msra.mxu0 0.0
    %2350 = vmatprep.subr.mxu0 0.0
    %2351 = vmatpush2.msra.mxu0 0.0
    %2352 = vmatprep.subr.mxu0 0.0
    %2353 = vmatpush2.msra.mxu0 0.0
    %2354 = vmatprep.mubr.f32.mxu0 0.0
    %2355 = vmatmul.mubr.f32.gmra.mxu0 %v2267
    %v2356 = vpop.f32.mrf.mxu0
    %v2357 = vadd.f32 0.0, %v2356
    %v2358 = vpop.f32.mrf.mxu0
    %2359 = vmatprep.mubr.f32.mxu0 0.0
    %2360 = vmatmul.mubr.f32.gmra.mxu0 %v2270
    %v2361 = vpop.f32.mrf.mxu0
    %v2362 = vadd.f32 0.0, %v2361
    %v2363 = vpop.f32.mrf.mxu0
    %2364 = vmatprep.mubr.f32.mxu0 0.0
    %2365 = vmatmul.mubr.f32.gmra.mxu0 %v2273
    %v2366 = vpop.f32.mrf.mxu0
    %v2367 = vadd.f32 0.0, %v2366
    %v2368 = vpop.f32.mrf.mxu0
    %2369 = vmatprep.mubr.f32.mxu0 0.0
    %2370 = vmatmul.mubr.f32.gmra.mxu0 %v2276
    %v2371 = vpop.f32.mrf.mxu0
    %v2372 = vadd.f32 0.0, %v2371
    %v2373 = vpop.f32.mrf.mxu0
    %2374 = vmatprep.mubr.f32.mxu0 0.0
    %2375 = vmatmul.mubr.f32.gmra.mxu0 %v2279
    %v2376 = vpop.f32.mrf.mxu0
    %v2377 = vadd.f32 0.0, %v2376
    %v2378 = vpop.f32.mrf.mxu0
    %2379 = vmatprep.mubr.f32.mxu0 0.0
    %2380 = vmatmul.mubr.f32.gmra.mxu0 %v2282
    %v2381 = vpop.f32.mrf.mxu0
    %v2382 = vadd.f32 0.0, %v2381
    %v2383 = vpop.f32.mrf.mxu0
    %2384 = vmatprep.mubr.f32.mxu0 0.0
    %2385 = vmatmul.mubr.f32.gmra.mxu0 %v2285
    %v2386 = vpop.f32.mrf.mxu0
    %v2387 = vadd.f32 0.0, %v2386
    %v2388 = vpop.f32.mrf.mxu0
    %2389 = vmatprep.mubr.f32.mxu0 0.0
    %2390 = vmatmul.mubr.f32.gmra.mxu0 %v2288
    %v2391 = vpop.f32.mrf.mxu0
    %v2392 = vadd.f32 0.0, %v2391
    %v2393 = vpop.f32.mrf.mxu0
    %2394 = vdwg.mxu0
    %v2396 = vsel %vm1432, %v2089, 0
    %v2399 = vsel %vm1432, %v2090, 0
    %v2402 = vsel %vm1432, %v2091, 0
    %v2405 = vsel %vm1432, %v2092, 0
    %v2408 = vsel %vm1432, %v2093, 0
    %v2411 = vsel %vm1432, %v2094, 0
    %v2414 = vsel %vm1432, %v2095, 0
    %v2417 = vsel %vm1432, %v2096, 0
    %2419 = vmatprep.subr.mxu0 0.0
    %2420 = vmatpush1.msra.mxu0 0.0
    %2421 = vmatprep.subr.mxu0 0.0
    %2422 = vmatpush1.msra.mxu0 0.0
    %2423 = vmatprep.subr.mxu0 0.0
    %2424 = vmatpush1.msra.mxu0 0.0
    %2425 = vmatprep.subr.mxu0 0.0
    %2426 = vmatpush1.msra.mxu0 0.0
    %2427 = vmatprep.subr.mxu0 0.0
    %2428 = vmatpush1.msra.mxu0 0.0
    %2429 = vmatprep.subr.mxu0 0.0
    %2430 = vmatpush1.msra.mxu0 0.0
    %2431 = vmatprep.subr.mxu0 0.0
    %2432 = vmatpush1.msra.mxu0 0.0
    %2433 = vmatprep.subr.mxu0 0.0
    %2434 = vmatpush1.msra.mxu0 0.0
    %2435 = vmatprep.subr.mxu0 0.0
    %2436 = vmatpush1.msra.mxu0 %v166
    %2437 = vmatprep.subr.mxu0 0.0
    %2438 = vmatpush1.msra.mxu0 %v165
    %2439 = vmatprep.subr.mxu0 0.0
    %2440 = vmatpush1.msra.mxu0 %v164
    %2441 = vmatprep.subr.mxu0 0.0
    %2442 = vmatpush1.msra.mxu0 %v163
    %2443 = vmatprep.subr.mxu0 0.0
    %2444 = vmatpush1.msra.mxu0 %v162
    %2445 = vmatprep.subr.mxu0 0.0
    %2446 = vmatpush1.msra.mxu0 %v161
    %2447 = vmatprep.subr.mxu0 0.0
    %2448 = vmatpush1.msra.mxu0 %v160
    %2449 = vmatprep.subr.mxu0 0.0
    %2450 = vmatpush1.msra.mxu0 %v159
    %2451 = vmatprep.subr.mxu0 0.0
    %2452 = vmatpush2.msra.mxu0 0.0
    %2453 = vmatprep.subr.mxu0 0.0
    %2454 = vmatpush2.msra.mxu0 0.0
    %2455 = vmatprep.subr.mxu0 0.0
    %2456 = vmatpush2.msra.mxu0 0.0
    %2457 = vmatprep.subr.mxu0 0.0
    %2458 = vmatpush2.msra.mxu0 0.0
    %2459 = vmatprep.subr.mxu0 0.0
    %2460 = vmatpush2.msra.mxu0 0.0
    %2461 = vmatprep.subr.mxu0 0.0
    %2462 = vmatpush2.msra.mxu0 0.0
    %2463 = vmatprep.subr.mxu0 0.0
    %2464 = vmatpush2.msra.mxu0 0.0
    %2465 = vmatprep.subr.mxu0 0.0
    %2466 = vmatpush2.msra.mxu0 0.0
    %2467 = vmatprep.subr.mxu0 0.0
    %2468 = vmatpush2.msra.mxu0 0.0
    %2469 = vmatprep.subr.mxu0 0.0
    %2470 = vmatpush2.msra.mxu0 0.0
    %2471 = vmatprep.subr.mxu0 0.0
    %2472 = vmatpush2.msra.mxu0 0.0
    %2473 = vmatprep.subr.mxu0 0.0
    %2474 = vmatpush2.msra.mxu0 0.0
    %2475 = vmatprep.subr.mxu0 0.0
    %2476 = vmatpush2.msra.mxu0 0.0
    %2477 = vmatprep.subr.mxu0 0.0
    %2478 = vmatpush2.msra.mxu0 0.0
    %2479 = vmatprep.subr.mxu0 0.0
    %2480 = vmatpush2.msra.mxu0 0.0
    %2481 = vmatprep.subr.mxu0 0.0
    %2482 = vmatpush2.msra.mxu0 0.0
    %2483 = vmatprep.mubr.f32.mxu0 0.0
    %2484 = vmatmul.mubr.f32.gmra.mxu0 %v2396
    %v2485 = vpop.f32.mrf.mxu0
    %v2486 = vadd.f32 0.0, %v2485
    %v2487 = vpop.f32.mrf.mxu0
    %2488 = vmatprep.mubr.f32.mxu0 0.0
    %2489 = vmatmul.mubr.f32.gmra.mxu0 %v2399
    %v2490 = vpop.f32.mrf.mxu0
    %v2491 = vadd.f32 0.0, %v2490
    %v2492 = vpop.f32.mrf.mxu0
    %2493 = vmatprep.mubr.f32.mxu0 0.0
    %2494 = vmatmul.mubr.f32.gmra.mxu0 %v2402
    %v2495 = vpop.f32.mrf.mxu0
    %v2496 = vadd.f32 0.0, %v2495
    %v2497 = vpop.f32.mrf.mxu0
    %2498 = vmatprep.mubr.f32.mxu0 0.0
    %2499 = vmatmul.mubr.f32.gmra.mxu0 %v2405
    %v2500 = vpop.f32.mrf.mxu0
    %v2501 = vadd.f32 0.0, %v2500
    %v2502 = vpop.f32.mrf.mxu0
    %2503 = vmatprep.mubr.f32.mxu0 0.0
    %2504 = vmatmul.mubr.f32.gmra.mxu0 %v2408
    %v2505 = vpop.f32.mrf.mxu0
    %v2506 = vadd.f32 0.0, %v2505
    %v2507 = vpop.f32.mrf.mxu0
    %2508 = vmatprep.mubr.f32.mxu0 0.0
    %2509 = vmatmul.mubr.f32.gmra.mxu0 %v2411
    %v2510 = vpop.f32.mrf.mxu0
    %v2511 = vadd.f32 0.0, %v2510
    %v2512 = vpop.f32.mrf.mxu0
    %2513 = vmatprep.mubr.f32.mxu0 0.0
    %2514 = vmatmul.mubr.f32.gmra.mxu0 %v2414
    %v2515 = vpop.f32.mrf.mxu0
    %v2516 = vadd.f32 0.0, %v2515
    %v2517 = vpop.f32.mrf.mxu0
    %2518 = vmatprep.mubr.f32.mxu0 0.0
    %2519 = vmatmul.mubr.f32.gmra.mxu0 %v2417
    %v2520 = vpop.f32.mrf.mxu0
    %v2521 = vadd.f32 0.0, %v2520
    %v2522 = vpop.f32.mrf.mxu0
    %2523 = vdwg.mxu0
    %v2525 = vsel %vm1432, %v2097, 0
    %v2528 = vsel %vm1432, %v2098, 0
    %v2531 = vsel %vm1432, %v2099, 0
    %v2534 = vsel %vm1432, %v2100, 0
    %v2537 = vsel %vm1432, %v2101, 0
    %v2540 = vsel %vm1432, %v2102, 0
    %v2543 = vsel %vm1432, %v2103, 0
    %v2546 = vsel %vm1432, %v2104, 0
    %2548 = vmatprep.subr.mxu0 0.0
    %2549 = vmatpush1.msra.mxu0 0.0
    %2550 = vmatprep.subr.mxu0 0.0
    %2551 = vmatpush1.msra.mxu0 0.0
    %2552 = vmatprep.subr.mxu0 0.0
    %2553 = vmatpush1.msra.mxu0 0.0
    %2554 = vmatprep.subr.mxu0 0.0
    %2555 = vmatpush1.msra.mxu0 0.0
    %2556 = vmatprep.subr.mxu0 0.0
    %2557 = vmatpush1.msra.mxu0 0.0
    %2558 = vmatprep.subr.mxu0 0.0
    %2559 = vmatpush1.msra.mxu0 0.0
    %2560 = vmatprep.subr.mxu0 0.0
    %2561 = vmatpush1.msra.mxu0 0.0
    %2562 = vmatprep.subr.mxu0 0.0
    %2563 = vmatpush1.msra.mxu0 0.0
    %2564 = vmatprep.subr.mxu0 0.0
    %2565 = vmatpush1.msra.mxu0 %v174
    %2566 = vmatprep.subr.mxu0 0.0
    %2567 = vmatpush1.msra.mxu0 %v173
    %2568 = vmatprep.subr.mxu0 0.0
    %2569 = vmatpush1.msra.mxu0 %v172
    %2570 = vmatprep.subr.mxu0 0.0
    %2571 = vmatpush1.msra.mxu0 %v171
    %2572 = vmatprep.subr.mxu0 0.0
    %2573 = vmatpush1.msra.mxu0 %v170
    %2574 = vmatprep.subr.mxu0 0.0
    %2575 = vmatpush1.msra.mxu0 %v169
    %2576 = vmatprep.subr.mxu0 0.0
    %2577 = vmatpush1.msra.mxu0 %v168
    %2578 = vmatprep.subr.mxu0 0.0
    %2579 = vmatpush1.msra.mxu0 %v167
    %2580 = vmatprep.subr.mxu0 0.0
    %2581 = vmatpush2.msra.mxu0 0.0
    %2582 = vmatprep.subr.mxu0 0.0
    %2583 = vmatpush2.msra.mxu0 0.0
    %2584 = vmatprep.subr.mxu0 0.0
    %2585 = vmatpush2.msra.mxu0 0.0
    %2586 = vmatprep.subr.mxu0 0.0
    %2587 = vmatpush2.msra.mxu0 0.0
    %2588 = vmatprep.subr.mxu0 0.0
    %2589 = vmatpush2.msra.mxu0 0.0
    %2590 = vmatprep.subr.mxu0 0.0
    %2591 = vmatpush2.msra.mxu0 0.0
    %2592 = vmatprep.subr.mxu0 0.0
    %2593 = vmatpush2.msra.mxu0 0.0
    %2594 = vmatprep.subr.mxu0 0.0
    %2595 = vmatpush2.msra.mxu0 0.0
    %2596 = vmatprep.subr.mxu0 0.0
    %2597 = vmatpush2.msra.mxu0 0.0
    %2598 = vmatprep.subr.mxu0 0.0
    %2599 = vmatpush2.msra.mxu0 0.0
    %2600 = vmatprep.subr.mxu0 0.0
    %2601 = vmatpush2.msra.mxu0 0.0
    %2602 = vmatprep.subr.mxu0 0.0
    %2603 = vmatpush2.msra.mxu0 0.0
    %2604 = vmatprep.subr.mxu0 0.0
    %2605 = vmatpush2.msra.mxu0 0.0
    %2606 = vmatprep.subr.mxu0 0.0
    %2607 = vmatpush2.msra.mxu0 0.0
    %2608 = vmatprep.subr.mxu0 0.0
    %2609 = vmatpush2.msra.mxu0 0.0
    %2610 = vmatprep.subr.mxu0 0.0
    %2611 = vmatpush2.msra.mxu0 0.0
    %2612 = vmatprep.mubr.f32.mxu0 0.0
    %2613 = vmatmul.mubr.f32.gmra.mxu0 %v2525
    %v2614 = vpop.f32.mrf.mxu0
    %v2615 = vadd.f32 0.0, %v2614
    %v2616 = vpop.f32.mrf.mxu0
    %2617 = vmatprep.mubr.f32.mxu0 0.0
    %2618 = vmatmul.mubr.f32.gmra.mxu0 %v2528
    %v2619 = vpop.f32.mrf.mxu0
    %v2620 = vadd.f32 0.0, %v2619
    %v2621 = vpop.f32.mrf.mxu0
    %2622 = vmatprep.mubr.f32.mxu0 0.0
    %2623 = vmatmul.mubr.f32.gmra.mxu0 %v2531
    %v2624 = vpop.f32.mrf.mxu0
    %v2625 = vadd.f32 0.0, %v2624
    %v2626 = vpop.f32.mrf.mxu0
    %2627 = vmatprep.mubr.f32.mxu0 0.0
    %2628 = vmatmul.mubr.f32.gmra.mxu0 %v2534
    %v2629 = vpop.f32.mrf.mxu0
    %v2630 = vadd.f32 0.0, %v2629
    %v2631 = vpop.f32.mrf.mxu0
    %2632 = vmatprep.mubr.f32.mxu0 0.0
    %2633 = vmatmul.mubr.f32.gmra.mxu0 %v2537
    %v2634 = vpop.f32.mrf.mxu0
    %v2635 = vadd.f32 0.0, %v2634
    %v2636 = vpop.f32.mrf.mxu0
    %2637 = vmatprep.mubr.f32.mxu0 0.0
    %2638 = vmatmul.mubr.f32.gmra.mxu0 %v2540
    %v2639 = vpop.f32.mrf.mxu0
    %v2640 = vadd.f32 0.0, %v2639
    %v2641 = vpop.f32.mrf.mxu0
    %2642 = vmatprep.mubr.f32.mxu0 0.0
    %2643 = vmatmul.mubr.f32.gmra.mxu0 %v2543
    %v2644 = vpop.f32.mrf.mxu0
    %v2645 = vadd.f32 0.0, %v2644
    %v2646 = vpop.f32.mrf.mxu0
    %2647 = vmatprep.mubr.f32.mxu0 0.0
    %2648 = vmatmul.mubr.f32.gmra.mxu0 %v2546
    %v2649 = vpop.f32.mrf.mxu0
    %v2650 = vadd.f32 0.0, %v2649
    %v2651 = vpop.f32.mrf.mxu0
    %2652 = vdwg.mxu0
    %v2654 = vsel %vm1432, %v2105, 0
    %v2657 = vsel %vm1432, %v2106, 0
    %v2660 = vsel %vm1432, %v2107, 0
    %v2663 = vsel %vm1432, %v2108, 0
    %v2666 = vsel %vm1432, %v2109, 0
    %v2669 = vsel %vm1432, %v2110, 0
    %v2672 = vsel %vm1432, %v2111, 0
    %v2675 = vsel %vm1432, %v2112, 0
    %2677 = vmatprep.subr.mxu0 0.0
    %2678 = vmatpush1.msra.mxu0 0.0
    %2679 = vmatprep.subr.mxu0 0.0
    %2680 = vmatpush1.msra.mxu0 0.0
    %2681 = vmatprep.subr.mxu0 0.0
    %2682 = vmatpush1.msra.mxu0 0.0
    %2683 = vmatprep.subr.mxu0 0.0
    %2684 = vmatpush1.msra.mxu0 0.0
    %2685 = vmatprep.subr.mxu0 0.0
    %2686 = vmatpush1.msra.mxu0 0.0
    %2687 = vmatprep.subr.mxu0 0.0
    %2688 = vmatpush1.msra.mxu0 0.0
    %2689 = vmatprep.subr.mxu0 0.0
    %2690 = vmatpush1.msra.mxu0 0.0
    %2691 = vmatprep.subr.mxu0 0.0
    %2692 = vmatpush1.msra.mxu0 0.0
    %2693 = vmatprep.subr.mxu0 0.0
    %2694 = vmatpush1.msra.mxu0 %v182
    %2695 = vmatprep.subr.mxu0 0.0
    %2696 = vmatpush1.msra.mxu0 %v181
    %2697 = vmatprep.subr.mxu0 0.0
    %2698 = vmatpush1.msra.mxu0 %v180
    %2699 = vmatprep.subr.mxu0 0.0
    %2700 = vmatpush1.msra.mxu0 %v179
    %2701 = vmatprep.subr.mxu0 0.0
    %2702 = vmatpush1.msra.mxu0 %v178
    %2703 = vmatprep.subr.mxu0 0.0
    %2704 = vmatpush1.msra.mxu0 %v177
    %2705 = vmatprep.subr.mxu0 0.0
    %2706 = vmatpush1.msra.mxu0 %v176
    %2707 = vmatprep.subr.mxu0 0.0
    %2708 = vmatpush1.msra.mxu0 %v175
    %2709 = vmatprep.subr.mxu0 0.0
    %2710 = vmatpush2.msra.mxu0 0.0
    %2711 = vmatprep.subr.mxu0 0.0
    %2712 = vmatpush2.msra.mxu0 0.0
    %2713 = vmatprep.subr.mxu0 0.0
    %2714 = vmatpush2.msra.mxu0 0.0
    %2715 = vmatprep.subr.mxu0 0.0
    %2716 = vmatpush2.msra.mxu0 0.0
    %2717 = vmatprep.subr.mxu0 0.0
    %2718 = vmatpush2.msra.mxu0 0.0
    %2719 = vmatprep.subr.mxu0 0.0
    %2720 = vmatpush2.msra.mxu0 0.0
    %2721 = vmatprep.subr.mxu0 0.0
    %2722 = vmatpush2.msra.mxu0 0.0
    %2723 = vmatprep.subr.mxu0 0.0
    %2724 = vmatpush2.msra.mxu0 0.0
    %2725 = vmatprep.subr.mxu0 0.0
    %2726 = vmatpush2.msra.mxu0 0.0
    %2727 = vmatprep.subr.mxu0 0.0
    %2728 = vmatpush2.msra.mxu0 0.0
    %2729 = vmatprep.subr.mxu0 0.0
    %2730 = vmatpush2.msra.mxu0 0.0
    %2731 = vmatprep.subr.mxu0 0.0
    %2732 = vmatpush2.msra.mxu0 0.0
    %2733 = vmatprep.subr.mxu0 0.0
    %2734 = vmatpush2.msra.mxu0 0.0
    %2735 = vmatprep.subr.mxu0 0.0
    %2736 = vmatpush2.msra.mxu0 0.0
    %2737 = vmatprep.subr.mxu0 0.0
    %2738 = vmatpush2.msra.mxu0 0.0
    %2739 = vmatprep.subr.mxu0 0.0
    %2740 = vmatpush2.msra.mxu0 0.0
    %2741 = vmatprep.mubr.f32.mxu0 0.0
    %2742 = vmatmul.mubr.f32.gmra.mxu0 %v2654
    %v2743 = vpop.f32.mrf.mxu0
    %v2744 = vadd.f32 0.0, %v2743
    %v2745 = vpop.f32.mrf.mxu0
    %2746 = vmatprep.mubr.f32.mxu0 0.0
    %2747 = vmatmul.mubr.f32.gmra.mxu0 %v2657
    %v2748 = vpop.f32.mrf.mxu0
    %v2749 = vadd.f32 0.0, %v2748
    %v2750 = vpop.f32.mrf.mxu0
    %2751 = vmatprep.mubr.f32.mxu0 0.0
    %2752 = vmatmul.mubr.f32.gmra.mxu0 %v2660
    %v2753 = vpop.f32.mrf.mxu0
    %v2754 = vadd.f32 0.0, %v2753
    %v2755 = vpop.f32.mrf.mxu0
    %2756 = vmatprep.mubr.f32.mxu0 0.0
    %2757 = vmatmul.mubr.f32.gmra.mxu0 %v2663
    %v2758 = vpop.f32.mrf.mxu0
    %v2759 = vadd.f32 0.0, %v2758
    %v2760 = vpop.f32.mrf.mxu0
    %2761 = vmatprep.mubr.f32.mxu0 0.0
    %2762 = vmatmul.mubr.f32.gmra.mxu0 %v2666
    %v2763 = vpop.f32.mrf.mxu0
    %v2764 = vadd.f32 0.0, %v2763
    %v2765 = vpop.f32.mrf.mxu0
    %2766 = vmatprep.mubr.f32.mxu0 0.0
    %2767 = vmatmul.mubr.f32.gmra.mxu0 %v2669
    %v2768 = vpop.f32.mrf.mxu0
    %v2769 = vadd.f32 0.0, %v2768
    %v2770 = vpop.f32.mrf.mxu0
    %2771 = vmatprep.mubr.f32.mxu0 0.0
    %2772 = vmatmul.mubr.f32.gmra.mxu0 %v2672
    %v2773 = vpop.f32.mrf.mxu0
    %v2774 = vadd.f32 0.0, %v2773
    %v2775 = vpop.f32.mrf.mxu0
    %2776 = vmatprep.mubr.f32.mxu0 0.0
    %2777 = vmatmul.mubr.f32.gmra.mxu0 %v2675
    %v2778 = vpop.f32.mrf.mxu0
    %v2779 = vadd.f32 0.0, %v2778
    %v2780 = vpop.f32.mrf.mxu0
    %2781 = vdwg.mxu0
    %v2783 = vsel %vm1432, %v2113, 0
    %v2786 = vsel %vm1432, %v2114, 0
    %v2789 = vsel %vm1432, %v2115, 0
    %v2792 = vsel %vm1432, %v2116, 0
    %v2795 = vsel %vm1432, %v2117, 0
    %v2798 = vsel %vm1432, %v2118, 0
    %v2801 = vsel %vm1432, %v2119, 0
    %v2804 = vsel %vm1432, %v2120, 0
    %2806 = vmatprep.subr.mxu0 0.0
    %2807 = vmatpush1.msra.mxu0 0.0
    %2808 = vmatprep.subr.mxu0 0.0
    %2809 = vmatpush1.msra.mxu0 0.0
    %2810 = vmatprep.subr.mxu0 0.0
    %2811 = vmatpush1.msra.mxu0 0.0
    %2812 = vmatprep.subr.mxu0 0.0
    %2813 = vmatpush1.msra.mxu0 0.0
    %2814 = vmatprep.subr.mxu0 0.0
    %2815 = vmatpush1.msra.mxu0 0.0
    %2816 = vmatprep.subr.mxu0 0.0
    %2817 = vmatpush1.msra.mxu0 0.0
    %2818 = vmatprep.subr.mxu0 0.0
    %2819 = vmatpush1.msra.mxu0 0.0
    %2820 = vmatprep.subr.mxu0 0.0
    %2821 = vmatpush1.msra.mxu0 0.0
    %2822 = vmatprep.subr.mxu0 0.0
    %2823 = vmatpush1.msra.mxu0 %v190
    %2824 = vmatprep.subr.mxu0 0.0
    %2825 = vmatpush1.msra.mxu0 %v189
    %2826 = vmatprep.subr.mxu0 0.0
    %2827 = vmatpush1.msra.mxu0 %v188
    %2828 = vmatprep.subr.mxu0 0.0
    %2829 = vmatpush1.msra.mxu0 %v187
    %2830 = vmatprep.subr.mxu0 0.0
    %2831 = vmatpush1.msra.mxu0 %v186
    %2832 = vmatprep.subr.mxu0 0.0
    %2833 = vmatpush1.msra.mxu0 %v185
    %2834 = vmatprep.subr.mxu0 0.0
    %2835 = vmatpush1.msra.mxu0 %v184
    %2836 = vmatprep.subr.mxu0 0.0
    %2837 = vmatpush1.msra.mxu0 %v183
    %2838 = vmatprep.subr.mxu0 0.0
    %2839 = vmatpush2.msra.mxu0 0.0
    %2840 = vmatprep.subr.mxu0 0.0
    %2841 = vmatpush2.msra.mxu0 0.0
    %2842 = vmatprep.subr.mxu0 0.0
    %2843 = vmatpush2.msra.mxu0 0.0
    %2844 = vmatprep.subr.mxu0 0.0
    %2845 = vmatpush2.msra.mxu0 0.0
    %2846 = vmatprep.subr.mxu0 0.0
    %2847 = vmatpush2.msra.mxu0 0.0
    %2848 = vmatprep.subr.mxu0 0.0
    %2849 = vmatpush2.msra.mxu0 0.0
    %2850 = vmatprep.subr.mxu0 0.0
    %2851 = vmatpush2.msra.mxu0 0.0
    %2852 = vmatprep.subr.mxu0 0.0
    %2853 = vmatpush2.msra.mxu0 0.0
    %2854 = vmatprep.subr.mxu0 0.0
    %2855 = vmatpush2.msra.mxu0 0.0
    %2856 = vmatprep.subr.mxu0 0.0
    %2857 = vmatpush2.msra.mxu0 0.0
    %2858 = vmatprep.subr.mxu0 0.0
    %2859 = vmatpush2.msra.mxu0 0.0
    %2860 = vmatprep.subr.mxu0 0.0
    %2861 = vmatpush2.msra.mxu0 0.0
    %2862 = vmatprep.subr.mxu0 0.0
    %2863 = vmatpush2.msra.mxu0 0.0
    %2864 = vmatprep.subr.mxu0 0.0
    %2865 = vmatpush2.msra.mxu0 0.0
    %2866 = vmatprep.subr.mxu0 0.0
    %2867 = vmatpush2.msra.mxu0 0.0
    %2868 = vmatprep.subr.mxu0 0.0
    %2869 = vmatpush2.msra.mxu0 0.0
    %2870 = vmatprep.mubr.f32.mxu0 0.0
    %2871 = vmatmul.mubr.f32.gmra.mxu0 %v2783
    %v2872 = vpop.f32.mrf.mxu0
    %v2873 = vadd.f32 0.0, %v2872
    %v2874 = vpop.f32.mrf.mxu0
    %2875 = vmatprep.mubr.f32.mxu0 0.0
    %2876 = vmatmul.mubr.f32.gmra.mxu0 %v2786
    %v2877 = vpop.f32.mrf.mxu0
    %v2878 = vadd.f32 0.0, %v2877
    %v2879 = vpop.f32.mrf.mxu0
    %2880 = vmatprep.mubr.f32.mxu0 0.0
    %2881 = vmatmul.mubr.f32.gmra.mxu0 %v2789
    %v2882 = vpop.f32.mrf.mxu0
    %v2883 = vadd.f32 0.0, %v2882
    %v2884 = vpop.f32.mrf.mxu0
    %2885 = vmatprep.mubr.f32.mxu0 0.0
    %2886 = vmatmul.mubr.f32.gmra.mxu0 %v2792
    %v2887 = vpop.f32.mrf.mxu0
    %v2888 = vadd.f32 0.0, %v2887
    %v2889 = vpop.f32.mrf.mxu0
    %2890 = vmatprep.mubr.f32.mxu0 0.0
    %2891 = vmatmul.mubr.f32.gmra.mxu0 %v2795
    %v2892 = vpop.f32.mrf.mxu0
    %v2893 = vadd.f32 0.0, %v2892
    %v2894 = vpop.f32.mrf.mxu0
    %2895 = vmatprep.mubr.f32.mxu0 0.0
    %2896 = vmatmul.mubr.f32.gmra.mxu0 %v2798
    %v2897 = vpop.f32.mrf.mxu0
    %v2898 = vadd.f32 0.0, %v2897
    %v2899 = vpop.f32.mrf.mxu0
    %2900 = vmatprep.mubr.f32.mxu0 0.0
    %2901 = vmatmul.mubr.f32.gmra.mxu0 %v2801
    %v2902 = vpop.f32.mrf.mxu0
    %v2903 = vadd.f32 0.0, %v2902
    %v2904 = vpop.f32.mrf.mxu0
    %2905 = vmatprep.mubr.f32.mxu0 0.0
    %2906 = vmatmul.mubr.f32.gmra.mxu0 %v2804
    %v2907 = vpop.f32.mrf.mxu0
    %v2908 = vadd.f32 0.0, %v2907
    %v2909 = vpop.f32.mrf.mxu0
    %2910 = vdwg.mxu0
    %v2912 = vsel %vm1432, %v2121, 0
    %v2915 = vsel %vm1432, %v2122, 0
    %v2918 = vsel %vm1432, %v2123, 0
    %v2921 = vsel %vm1432, %v2124, 0
    %v2924 = vsel %vm1432, %v2125, 0
    %v2927 = vsel %vm1432, %v2126, 0
    %v2930 = vsel %vm1432, %v2127, 0
    %v2933 = vsel %vm1432, %v2128, 0
    %2935 = vmatprep.subr.mxu0 0.0
    %2936 = vmatpush1.msra.mxu0 0.0
    %2937 = vmatprep.subr.mxu0 0.0
    %2938 = vmatpush1.msra.mxu0 0.0
    %2939 = vmatprep.subr.mxu0 0.0
    %2940 = vmatpush1.msra.mxu0 0.0
    %2941 = vmatprep.subr.mxu0 0.0
    %2942 = vmatpush1.msra.mxu0 0.0
    %2943 = vmatprep.subr.mxu0 0.0
    %2944 = vmatpush1.msra.mxu0 0.0
    %2945 = vmatprep.subr.mxu0 0.0
    %2946 = vmatpush1.msra.mxu0 0.0
    %2947 = vmatprep.subr.mxu0 0.0
    %2948 = vmatpush1.msra.mxu0 0.0
    %2949 = vmatprep.subr.mxu0 0.0
    %2950 = vmatpush1.msra.mxu0 0.0
    %2951 = vmatprep.subr.mxu0 0.0
    %2952 = vmatpush1.msra.mxu0 %v198
    %2953 = vmatprep.subr.mxu0 0.0
    %2954 = vmatpush1.msra.mxu0 %v197
    %2955 = vmatprep.subr.mxu0 0.0
    %2956 = vmatpush1.msra.mxu0 %v196
    %2957 = vmatprep.subr.mxu0 0.0
    %2958 = vmatpush1.msra.mxu0 %v195
    %2959 = vmatprep.subr.mxu0 0.0
    %2960 = vmatpush1.msra.mxu0 %v194
    %2961 = vmatprep.subr.mxu0 0.0
    %2962 = vmatpush1.msra.mxu0 %v193
    %2963 = vmatprep.subr.mxu0 0.0
    %2964 = vmatpush1.msra.mxu0 %v192
    %2965 = vmatprep.subr.mxu0 0.0
    %2966 = vmatpush1.msra.mxu0 %v191
    %2967 = vmatprep.subr.mxu0 0.0
    %2968 = vmatpush2.msra.mxu0 0.0
    %2969 = vmatprep.subr.mxu0 0.0
    %2970 = vmatpush2.msra.mxu0 0.0
    %2971 = vmatprep.subr.mxu0 0.0
    %2972 = vmatpush2.msra.mxu0 0.0
    %2973 = vmatprep.subr.mxu0 0.0
    %2974 = vmatpush2.msra.mxu0 0.0
    %2975 = vmatprep.subr.mxu0 0.0
    %2976 = vmatpush2.msra.mxu0 0.0
    %2977 = vmatprep.subr.mxu0 0.0
    %2978 = vmatpush2.msra.mxu0 0.0
    %2979 = vmatprep.subr.mxu0 0.0
    %2980 = vmatpush2.msra.mxu0 0.0
    %2981 = vmatprep.subr.mxu0 0.0
    %2982 = vmatpush2.msra.mxu0 0.0
    %2983 = vmatprep.subr.mxu0 0.0
    %2984 = vmatpush2.msra.mxu0 0.0
    %2985 = vmatprep.subr.mxu0 0.0
    %2986 = vmatpush2.msra.mxu0 0.0
    %2987 = vmatprep.subr.mxu0 0.0
    %2988 = vmatpush2.msra.mxu0 0.0
    %2989 = vmatprep.subr.mxu0 0.0
    %2990 = vmatpush2.msra.mxu0 0.0
    %2991 = vmatprep.subr.mxu0 0.0
    %2992 = vmatpush2.msra.mxu0 0.0
    %2993 = vmatprep.subr.mxu0 0.0
    %2994 = vmatpush2.msra.mxu0 0.0
    %2995 = vmatprep.subr.mxu0 0.0
    %2996 = vmatpush2.msra.mxu0 0.0
    %2997 = vmatprep.subr.mxu0 0.0
    %2998 = vmatpush2.msra.mxu0 0.0
    %2999 = vmatprep.mubr.f32.mxu0 0.0
    %3000 = vmatmul.mubr.f32.gmra.mxu0 %v2912
    %v3001 = vpop.f32.mrf.mxu0
    %v3002 = vadd.f32 0.0, %v3001
    %v3003 = vpop.f32.mrf.mxu0
    %3004 = vmatprep.mubr.f32.mxu0 0.0
    %3005 = vmatmul.mubr.f32.gmra.mxu0 %v2915
    %v3006 = vpop.f32.mrf.mxu0
    %v3007 = vadd.f32 0.0, %v3006
    %v3008 = vpop.f32.mrf.mxu0
    %3009 = vmatprep.mubr.f32.mxu0 0.0
    %3010 = vmatmul.mubr.f32.gmra.mxu0 %v2918
    %v3011 = vpop.f32.mrf.mxu0
    %v3012 = vadd.f32 0.0, %v3011
    %v3013 = vpop.f32.mrf.mxu0
    %3014 = vmatprep.mubr.f32.mxu0 0.0
    %3015 = vmatmul.mubr.f32.gmra.mxu0 %v2921
    %v3016 = vpop.f32.mrf.mxu0
    %v3017 = vadd.f32 0.0, %v3016
    %v3018 = vpop.f32.mrf.mxu0
    %3019 = vmatprep.mubr.f32.mxu0 0.0
    %3020 = vmatmul.mubr.f32.gmra.mxu0 %v2924
    %v3021 = vpop.f32.mrf.mxu0
    %v3022 = vadd.f32 0.0, %v3021
    %v3023 = vpop.f32.mrf.mxu0
    %3024 = vmatprep.mubr.f32.mxu0 0.0
    %3025 = vmatmul.mubr.f32.gmra.mxu0 %v2927
    %v3026 = vpop.f32.mrf.mxu0
    %v3027 = vadd.f32 0.0, %v3026
    %v3028 = vpop.f32.mrf.mxu0
    %3029 = vmatprep.mubr.f32.mxu0 0.0
    %3030 = vmatmul.mubr.f32.gmra.mxu0 %v2930
    %v3031 = vpop.f32.mrf.mxu0
    %v3032 = vadd.f32 0.0, %v3031
    %v3033 = vpop.f32.mrf.mxu0
    %3034 = vmatprep.mubr.f32.mxu0 0.0
    %3035 = vmatmul.mubr.f32.gmra.mxu0 %v2933
    %v3036 = vpop.f32.mrf.mxu0
    %v3037 = vadd.f32 0.0, %v3036
    %v3038 = vpop.f32.mrf.mxu0
    %3039 = vdwg.mxu0
    %v3041 = vsel %vm1432, %v2129, 0
    %v3044 = vsel %vm1432, %v2130, 0
    %v3047 = vsel %vm1432, %v2131, 0
    %v3050 = vsel %vm1432, %v2132, 0
    %v3053 = vsel %vm1432, %v2133, 0
    %v3056 = vsel %vm1432, %v2134, 0
    %v3059 = vsel %vm1432, %v2135, 0
    %v3062 = vsel %vm1432, %v2136, 0
    %3064 = vmatprep.subr.mxu0 0.0
    %3065 = vmatpush1.msra.mxu0 0.0
    %3066 = vmatprep.subr.mxu0 0.0
    %3067 = vmatpush1.msra.mxu0 0.0
    %3068 = vmatprep.subr.mxu0 0.0
    %3069 = vmatpush1.msra.mxu0 0.0
    %3070 = vmatprep.subr.mxu0 0.0
    %3071 = vmatpush1.msra.mxu0 0.0
    %3072 = vmatprep.subr.mxu0 0.0
    %3073 = vmatpush1.msra.mxu0 0.0
    %3074 = vmatprep.subr.mxu0 0.0
    %3075 = vmatpush1.msra.mxu0 0.0
    %3076 = vmatprep.subr.mxu0 0.0
    %3077 = vmatpush1.msra.mxu0 0.0
    %3078 = vmatprep.subr.mxu0 0.0
    %3079 = vmatpush1.msra.mxu0 0.0
    %3080 = vmatprep.subr.mxu0 0.0
    %3081 = vmatpush1.msra.mxu0 %v206
    %3082 = vmatprep.subr.mxu0 0.0
    %3083 = vmatpush1.msra.mxu0 %v205
    %3084 = vmatprep.subr.mxu0 0.0
    %3085 = vmatpush1.msra.mxu0 %v204
    %3086 = vmatprep.subr.mxu0 0.0
    %3087 = vmatpush1.msra.mxu0 %v203
    %3088 = vmatprep.subr.mxu0 0.0
    %3089 = vmatpush1.msra.mxu0 %v202
    %3090 = vmatprep.subr.mxu0 0.0
    %3091 = vmatpush1.msra.mxu0 %v201
    %3092 = vmatprep.subr.mxu0 0.0
    %3093 = vmatpush1.msra.mxu0 %v200
    %3094 = vmatprep.subr.mxu0 0.0
    %3095 = vmatpush1.msra.mxu0 %v199
    %3096 = vmatprep.subr.mxu0 0.0
    %3097 = vmatpush2.msra.mxu0 0.0
    %3098 = vmatprep.subr.mxu0 0.0
    %3099 = vmatpush2.msra.mxu0 0.0
    %3100 = vmatprep.subr.mxu0 0.0
    %3101 = vmatpush2.msra.mxu0 0.0
    %3102 = vmatprep.subr.mxu0 0.0
    %3103 = vmatpush2.msra.mxu0 0.0
    %3104 = vmatprep.subr.mxu0 0.0
    %3105 = vmatpush2.msra.mxu0 0.0
    %3106 = vmatprep.subr.mxu0 0.0
    %3107 = vmatpush2.msra.mxu0 0.0
    %3108 = vmatprep.subr.mxu0 0.0
    %3109 = vmatpush2.msra.mxu0 0.0
    %3110 = vmatprep.subr.mxu0 0.0
    %3111 = vmatpush2.msra.mxu0 0.0
    %3112 = vmatprep.subr.mxu0 0.0
    %3113 = vmatpush2.msra.mxu0 0.0
    %3114 = vmatprep.subr.mxu0 0.0
    %3115 = vmatpush2.msra.mxu0 0.0
    %3116 = vmatprep.subr.mxu0 0.0
    %3117 = vmatpush2.msra.mxu0 0.0
    %3118 = vmatprep.subr.mxu0 0.0
    %3119 = vmatpush2.msra.mxu0 0.0
    %3120 = vmatprep.subr.mxu0 0.0
    %3121 = vmatpush2.msra.mxu0 0.0
    %3122 = vmatprep.subr.mxu0 0.0
    %3123 = vmatpush2.msra.mxu0 0.0
    %3124 = vmatprep.subr.mxu0 0.0
    %3125 = vmatpush2.msra.mxu0 0.0
    %3126 = vmatprep.subr.mxu0 0.0
    %3127 = vmatpush2.msra.mxu0 0.0
    %3128 = vmatprep.mubr.f32.mxu0 0.0
    %3129 = vmatmul.mubr.f32.gmra.mxu0 %v3041
    %v3130 = vpop.f32.mrf.mxu0
    %v3131 = vadd.f32 0.0, %v3130
    %v3132 = vpop.f32.mrf.mxu0
    %3133 = vmatprep.mubr.f32.mxu0 0.0
    %3134 = vmatmul.mubr.f32.gmra.mxu0 %v3044
    %v3135 = vpop.f32.mrf.mxu0
    %v3136 = vadd.f32 0.0, %v3135
    %v3137 = vpop.f32.mrf.mxu0
    %3138 = vmatprep.mubr.f32.mxu0 0.0
    %3139 = vmatmul.mubr.f32.gmra.mxu0 %v3047
    %v3140 = vpop.f32.mrf.mxu0
    %v3141 = vadd.f32 0.0, %v3140
    %v3142 = vpop.f32.mrf.mxu0
    %3143 = vmatprep.mubr.f32.mxu0 0.0
    %3144 = vmatmul.mubr.f32.gmra.mxu0 %v3050
    %v3145 = vpop.f32.mrf.mxu0
    %v3146 = vadd.f32 0.0, %v3145
    %v3147 = vpop.f32.mrf.mxu0
    %3148 = vmatprep.mubr.f32.mxu0 0.0
    %3149 = vmatmul.mubr.f32.gmra.mxu0 %v3053
    %v3150 = vpop.f32.mrf.mxu0
    %v3151 = vadd.f32 0.0, %v3150
    %v3152 = vpop.f32.mrf.mxu0
    %3153 = vmatprep.mubr.f32.mxu0 0.0
    %3154 = vmatmul.mubr.f32.gmra.mxu0 %v3056
    %v3155 = vpop.f32.mrf.mxu0
    %v3156 = vadd.f32 0.0, %v3155
    %v3157 = vpop.f32.mrf.mxu0
    %3158 = vmatprep.mubr.f32.mxu0 0.0
    %3159 = vmatmul.mubr.f32.gmra.mxu0 %v3059
    %v3160 = vpop.f32.mrf.mxu0
    %v3161 = vadd.f32 0.0, %v3160
    %v3162 = vpop.f32.mrf.mxu0
    %3163 = vmatprep.mubr.f32.mxu0 0.0
    %3164 = vmatmul.mubr.f32.gmra.mxu0 %v3062
    %v3165 = vpop.f32.mrf.mxu0
    %v3166 = vadd.f32 0.0, %v3165
    %v3167 = vpop.f32.mrf.mxu0
    %3168 = vdwg.mxu0
    %3169 = vst.msk [vmem:[#allocation2] sm:$0xff] %vm1432, %v2228
    %3170 = vst.msk [vmem:[#allocation2 + $0x8] sm:$0xff] %vm1432, %v2233
    %3171 = vst.msk [vmem:[#allocation2 + $0x10] sm:$0xff] %vm1432, %v2238
    %3172 = vst.msk [vmem:[#allocation2 + $0x18] sm:$0xff] %vm1432, %v2243
    %3173 = vst.msk [vmem:[#allocation2 + $0x20] sm:$0xff] %vm1432, %v2248
    %3174 = vst.msk [vmem:[#allocation2 + $0x28] sm:$0xff] %vm1432, %v2253
    %3175 = vst.msk [vmem:[#allocation2 + $0x30] sm:$0xff] %vm1432, %v2258
    %3176 = vst.msk [vmem:[#allocation2 + $0x38] sm:$0xff] %vm1432, %v2263
    %3177 = vst.msk [vmem:[#allocation2 + $0x40] sm:$0xff] %vm1432, %v2357
    %3178 = vst.msk [vmem:[#allocation2 + $0x48] sm:$0xff] %vm1432, %v2362
    %3179 = vst.msk [vmem:[#allocation2 + $0x50] sm:$0xff] %vm1432, %v2367
    %3180 = vst.msk [vmem:[#allocation2 + $0x58] sm:$0xff] %vm1432, %v2372
    %3181 = vst.msk [vmem:[#allocation2 + $0x60] sm:$0xff] %vm1432, %v2377
    %3182 = vst.msk [vmem:[#allocation2 + $0x68] sm:$0xff] %vm1432, %v2382
    %3183 = vst.msk [vmem:[#allocation2 + $0x70] sm:$0xff] %vm1432, %v2387
    %3184 = vst.msk [vmem:[#allocation2 + $0x78] sm:$0xff] %vm1432, %v2392
    %3185 = vst.msk [vmem:[#allocation2 + $0x80] sm:$0xff] %vm1432, %v2486
    %3186 = vst.msk [vmem:[#allocation2 + $0x88] sm:$0xff] %vm1432, %v2491
    %3187 = vst.msk [vmem:[#allocation2 + $0x90] sm:$0xff] %vm1432, %v2496
    %3188 = vst.msk [vmem:[#allocation2 + $0x98] sm:$0xff] %vm1432, %v2501
    %3189 = vst.msk [vmem:[#allocation2 + $0xa0] sm:$0xff] %vm1432, %v2506
    %3190 = vst.msk [vmem:[#allocation2 + $0xa8] sm:$0xff] %vm1432, %v2511
    %3191 = vst.msk [vmem:[#allocation2 + $0xb0] sm:$0xff] %vm1432, %v2516
    %3192 = vst.msk [vmem:[#allocation2 + $0xb8] sm:$0xff] %vm1432, %v2521
    %3193 = vst.msk [vmem:[#allocation2 + $0xc0] sm:$0xff] %vm1432, %v2615
    %3194 = vst.msk [vmem:[#allocation2 + $0xc8] sm:$0xff] %vm1432, %v2620
    %3195 = vst.msk [vmem:[#allocation2 + $0xd0] sm:$0xff] %vm1432, %v2625
    %3196 = vst.msk [vmem:[#allocation2 + $0xd8] sm:$0xff] %vm1432, %v2630
    %3197 = vst.msk [vmem:[#allocation2 + $0xe0] sm:$0xff] %vm1432, %v2635
    %3198 = vst.msk [vmem:[#allocation2 + $0xe8] sm:$0xff] %vm1432, %v2640
    %3199 = vst.msk [vmem:[#allocation2 + $0xf0] sm:$0xff] %vm1432, %v2645
    %3200 = vst.msk [vmem:[#allocation2 + $0xf8] sm:$0xff] %vm1432, %v2650
    %3201 = vst.msk [vmem:[#allocation2 + $0x100] sm:$0xff] %vm1432, %v2744
    %3202 = vst.msk [vmem:[#allocation2 + $0x108] sm:$0xff] %vm1432, %v2749
    %3203 = vst.msk [vmem:[#allocation2 + $0x110] sm:$0xff] %vm1432, %v2754
    %3204 = vst.msk [vmem:[#allocation2 + $0x118] sm:$0xff] %vm1432, %v2759
    %3205 = vst.msk [vmem:[#allocation2 + $0x120] sm:$0xff] %vm1432, %v2764
    %3206 = vst.msk [vmem:[#allocation2 + $0x128] sm:$0xff] %vm1432, %v2769
    %3207 = vst.msk [vmem:[#allocation2 + $0x130] sm:$0xff] %vm1432, %v2774
    %3208 = vst.msk [vmem:[#allocation2 + $0x138] sm:$0xff] %vm1432, %v2779
    %3209 = vst.msk [vmem:[#allocation2 + $0x140] sm:$0xff] %vm1432, %v2873
    %3210 = vst.msk [vmem:[#allocation2 + $0x148] sm:$0xff] %vm1432, %v2878
    %3211 = vst.msk [vmem:[#allocation2 + $0x150] sm:$0xff] %vm1432, %v2883
    %3212 = vst.msk [vmem:[#allocation2 + $0x158] sm:$0xff] %vm1432, %v2888
    %3213 = vst.msk [vmem:[#allocation2 + $0x160] sm:$0xff] %vm1432, %v2893
    %3214 = vst.msk [vmem:[#allocation2 + $0x168] sm:$0xff] %vm1432, %v2898
    %3215 = vst.msk [vmem:[#allocation2 + $0x170] sm:$0xff] %vm1432, %v2903
    %3216 = vst.msk [vmem:[#allocation2 + $0x178] sm:$0xff] %vm1432, %v2908
    %3217 = vst.msk [vmem:[#allocation2 + $0x180] sm:$0xff] %vm1432, %v3002
    %3218 = vst.msk [vmem:[#allocation2 + $0x188] sm:$0xff] %vm1432, %v3007
    %3219 = vst.msk [vmem:[#allocation2 + $0x190] sm:$0xff] %vm1432, %v3012
    %3220 = vst.msk [vmem:[#allocation2 + $0x198] sm:$0xff] %vm1432, %v3017
    %3221 = vst.msk [vmem:[#allocation2 + $0x1a0] sm:$0xff] %vm1432, %v3022
    %3222 = vst.msk [vmem:[#allocation2 + $0x1a8] sm:$0xff] %vm1432, %v3027
    %3223 = vst.msk [vmem:[#allocation2 + $0x1b0] sm:$0xff] %vm1432, %v3032
    %3224 = vst.msk [vmem:[#allocation2 + $0x1b8] sm:$0xff] %vm1432, %v3037
    %3225 = vst.msk [vmem:[#allocation2 + $0x1c0] sm:$0xff] %vm1432, %v3131
    %3226 = vst.msk [vmem:[#allocation2 + $0x1c8] sm:$0xff] %vm1432, %v3136
    %3227 = vst.msk [vmem:[#allocation2 + $0x1d0] sm:$0xff] %vm1432, %v3141
    %3228 = vst.msk [vmem:[#allocation2 + $0x1d8] sm:$0xff] %vm1432, %v3146
    %3229 = vst.msk [vmem:[#allocation2 + $0x1e0] sm:$0xff] %vm1432, %v3151
    %3230 = vst.msk [vmem:[#allocation2 + $0x1e8] sm:$0xff] %vm1432, %v3156
    %3231 = vst.msk [vmem:[#allocation2 + $0x1f0] sm:$0xff] %vm1432, %v3161
    %3232 = vst.msk [vmem:[#allocation2 + $0x1f8] sm:$0xff] %vm1432, %v3166
    // Predicated region
    $region14: #{tpu_custom_call.1} parent=1 // pred_check
      _
    $region15: #{tpu_custom_call.1} parent=1 // pred_check_branch
      %3234 = sbr.rel (0) target = $region17
    $region16: #{tpu_custom_call.1} parent=1 // pred_region
      %s3236 = ssub.s32 8192, 8192
      %3237 = vsyncadd [#allocation3], %s3236
      %s3238 = sshll.u32 [#allocation2], 4
      %s3239 = int_to_ptr.vmem [resolvable:$true] %s3238
      %3244 = dma.vmem_to_hbm [thread:$0]  %s3239, 8192, %s3, [#allocation3], 128, 128, 8
    $region17: #{tpu_custom_call.1} parent=1 // pred_fallthru
      _
    // Predicated region
    $region18: #{tpu_custom_call.1} parent=1 // pred_check
      _
    $region19: #{tpu_custom_call.1} parent=1 // pred_check_branch
      %3246 = sbr.rel (0) target = $region21
    $region20: #{tpu_custom_call.1} parent=1 // pred_region
      %3247 = dma.done [#allocation3], 8192
    $region21: #{tpu_custom_call.1} parent=1 // pred_fallthru
      _
    %3248 = vsyncpa [#allocation3], 1

</llo_original>
